<compile_context>
chip_gen: v7x
topology: tpu7x:2x2x1
jax: 0.10.0
libtpu: 0.0.40
codegen_flags: <defaults>
</compile_context>

<pallas_src>
import functools

import jax
import jax.numpy as jnp
from jax.experimental import pallas as pl
from jax.experimental.pallas import tpu as pltpu  # noqa: F401  (not required by this gridless kernel)


# ----------------------------------------------------------------------------
# Fused kernel: conv(+bias+ReLU+BN) as one token matmul, then all transformer
# layers (L static-unrolled; all weights resident in VMEM for the whole call).
# ----------------------------------------------------------------------------
def fused_image_encoder_kernel(
    aflat_ref, wstack_ref, cscale_ref, cshift_ref,
    blockmask_ref, keybias_ref, kmask_ref, vmask_ref,
    wqkv_ref, bqkv_ref, wo_ref, bo_ref, ln1w_ref, ln1b_ref,
    w1_ref, b1_ref, w2_ref, b2_ref, ln2w_ref, ln2b_ref,
    o_ref, *, B, S, D, H, L):
  f32 = jnp.float32
  bf16 = jnp.bfloat16
  BS = B * S
  R = H * BS                     # score columns, ordered (head, batch, key)

  # ---- Conv2d(4x4,s2,p1)+bias (bias folded into contraction) -> ReLU -> BN ----
  lin = jnp.dot(wstack_ref[...], aflat_ref[...], preferred_element_type=f32)
  x2d = jnp.maximum(lin, 0.0) * cscale_ref[...] + cshift_ref[...]    # (BS, D) f32

  # Additive attention bias: static cross-batch block mask (+-1e30) + per-call
  # key-padding bias (-1e9), combined ONCE before the layer loop.
  bias = blockmask_ref[...] + keybias_ref[...]                       # (BS, R)
  kmask = kmask_ref[...]                                             # (R, D)   f32 0/1
  vmask = vmask_ref[...]                                             # (R, 2D)  f32 0/1

  for l in range(L):             # static unroll; weights already in VMEM
    # ---- QKV projection (+ a bias-only ones block -> [Q | K | V | 1]) ----
    qkv = jnp.dot(x2d.astype(bf16), wqkv_ref[l],
                  preferred_element_type=f32) + bqkv_ref[l]          # (BS, 4D)
    q = qkv[:, :D]
    k = qkv[:, D:2 * D]
    von = qkv[:, 2 * D:]                                             # [V | 1] (BS, 2D)

    # Replicate K and [V|1] once per head block with a broadcast (no concats,
    # no transposes), masked so column block h only exposes head h's lanes.
    krep = (jnp.broadcast_to(k[None], (H, BS, D))
            .reshape(R, D) * kmask).astype(bf16)                     # (R, D)
    vrep = (jnp.broadcast_to(von[None], (H, BS, 2 * D))
            .reshape(R, 2 * D) * vmask).astype(bf16)                 # (R, 2D)

    # ---- scores for ALL batches and heads: one transposed-RHS matmul ----
    s = jax.lax.dot_general(q.astype(bf16), krep,
                            (((1,), (1,)), ((), ())),
                            preferred_element_type=f32) + bias       # (BS, R)
    s = s - jnp.max(s, axis=-1, keepdims=True)   # per-row const, cancels per head
    e = jnp.exp(s)                               # f32; masked cols underflow to 0

    # ---- numerators AND per-head denominators from ONE bf16 matmul ----
    nd = jnp.dot(e.astype(bf16), vrep, preferred_element_type=f32)   # (BS, 2D)
    ctx = nd[:, :D] * pl.reciprocal(nd[:, D:], approx=True)          # (BS, D) concat-head

    attn = jnp.dot(ctx.astype(bf16), wo_ref[l],
                   preferred_element_type=f32) + bo_ref[l]

    # ---- residual + LayerNorm 1 (post-norm, eps=1e-5, f32) ----
    y = x2d + attn
    mu = jnp.mean(y, axis=-1, keepdims=True)
    var = jnp.mean((y - mu) ** 2, axis=-1, keepdims=True)
    y = (y - mu) * jax.lax.rsqrt(var + 1e-5) * ln1w_ref[l] + ln1b_ref[l]

    # ---- feed-forward: Linear -> ReLU -> Linear ----
    h1 = jnp.dot(y.astype(bf16), w1_ref[l], preferred_element_type=f32) + b1_ref[l]
    h1 = jnp.maximum(h1, 0.0)
    h2 = jnp.dot(h1.astype(bf16), w2_ref[l], preferred_element_type=f32) + b2_ref[l]

    # ---- residual + LayerNorm 2 ----
    z = y + h2
    mu2 = jnp.mean(z, axis=-1, keepdims=True)
    var2 = jnp.mean((z - mu2) ** 2, axis=-1, keepdims=True)
    x2d = (z - mu2) * jax.lax.rsqrt(var2 + 1e-5) * ln2w_ref[l] + ln2b_ref[l]

  o_ref[...] = x2d                                                   # (BS, D) f32


# ----------------------------------------------------------------------------
# Parameter construction (deterministic, synthetic; PyTorch-like f32 canonical)
# ----------------------------------------------------------------------------
def prepare_kernel_layers(layers, nheads):
  """Stack per-layer weights, fold 1/sqrt(dh) into Q, append a bias-only ones
  block to the QKV projection (so the kernel gets [Q|K|V|1] from one matmul),
  and cast matmul weights to bf16 (accumulation is f32 inside the kernel)."""
  D = layers[0]["wqkv"].shape[0]
  L = len(layers)
  qscale = 1.0 / jnp.sqrt(jnp.float32(D // nheads))
  stack = lambda name: jnp.stack([lp[name] for lp in layers], axis=0)
  wqkv = stack("wqkv").at[:, :, :D].multiply(qscale)                 # (L, D, 3D)
  bqkv = stack("bqkv").at[:, :D].multiply(qscale)                    # (L, 3D)
  wqkv_ext = jnp.concatenate([wqkv, jnp.zeros((L, D, D), jnp.float32)], axis=2)
  bqkv_ext = jnp.concatenate([bqkv, jnp.ones((L, D), jnp.float32)], axis=1)
  return dict(
      wqkv=wqkv_ext.astype(jnp.bfloat16),
      bqkv=bqkv_ext[:, None, :],
      wo=stack("wo").astype(jnp.bfloat16),
      bo=stack("bo")[:, None, :],
      ln1w=stack("ln1w")[:, None, :],
      ln1b=stack("ln1b")[:, None, :],
      w1=stack("w1").astype(jnp.bfloat16),
      b1=stack("b1")[:, None, :],
      w2=stack("w2").astype(jnp.bfloat16),
      b2=stack("b2")[:, None, :],
      ln2w=stack("ln2w")[:, None, :],
      ln2b=stack("ln2b")[:, None, :],
  )


def init_params(key, channels, embed_dim, dim_fc, num_layers, nheads):
  keys = jax.random.split(key, 8 + num_layers)
  C, D, F = channels, embed_dim, dim_fc
  conv_w = 0.1 * jax.random.normal(keys[0], (C, C, 4, 4), jnp.float32)   # OIHW
  conv_b = 0.1 * jax.random.normal(keys[1], (C,), jnp.float32)
  bn_gamma = 1.0 + 0.1 * jax.random.normal(keys[2], (C,), jnp.float32)
  bn_beta = 0.1 * jax.random.normal(keys[3], (C,), jnp.float32)
  bn_mean = 0.1 * jax.random.normal(keys[4], (C,), jnp.float32)
  bn_var = 1.0 + 0.1 * jnp.abs(jax.random.normal(keys[5], (C,), jnp.float32))

  layers = []
  for l in range(num_layers):
    lk = jax.random.split(keys[8 + l], 12)
    s = 0.05
    layers.append(dict(
        wqkv=s * jax.random.normal(lk[0], (D, 3 * D), jnp.float32),
        bqkv=s * jax.random.normal(lk[1], (3 * D,), jnp.float32),
        wo=s * jax.random.normal(lk[2], (D, D), jnp.float32),
        bo=s * jax.random.normal(lk[3], (D,), jnp.float32),
        ln1w=1.0 + 0.1 * jax.random.normal(lk[4], (D,), jnp.float32),
        ln1b=0.1 * jax.random.normal(lk[5], (D,), jnp.float32),
        w1=s * jax.random.normal(lk[6], (D, F), jnp.float32),
        b1=s * jax.random.normal(lk[7], (F,), jnp.float32),
        w2=s * jax.random.normal(lk[8], (F, D), jnp.float32),
        b2=s * jax.random.normal(lk[9], (D,), jnp.float32),
        ln2w=1.0 + 0.1 * jax.random.normal(lk[10], (D,), jnp.float32),
        ln2b=0.1 * jax.random.normal(lk[11], (D,), jnp.float32),
    ))
  return dict(conv_w=conv_w, conv_b=conv_b, bn_gamma=bn_gamma, bn_beta=bn_beta,
              bn_mean=bn_mean, bn_var=bn_var, layers=layers,
              kernel_layers=prepare_kernel_layers(layers, nheads))


# ----------------------------------------------------------------------------
# One-time (per batch-size/config) precompute of input-independent operands.
# Hoisted out of the jitted forward so the per-call XLA glue is minimal.
# ----------------------------------------------------------------------------
def precompute_operands(params, *, batch, channels, height, width, embed_dim, nheads):
  B, C, D, H = batch, channels, embed_dim, nheads
  OH, OW = height // 2, width // 2
  P = OH * OW
  Kc = C * 16
  assert P % D == 0, "this kernel assumes OH*OW is a multiple of embedding_dim"
  nsplit = P // D
  S = C * nsplit
  dh = D // H

  # Conv folded into a block-diagonal (over batch) token-row weight so the
  # kernel's first matmul directly yields (B*S, D) tokens; the conv bias is
  # folded in as an extra contraction column (paired with a ones row in aflat).
  w_cols = params["conv_w"].reshape(C, Kc)                           # (Cout, K)
  wbig = (jnp.eye(nsplit, dtype=jnp.float32)[None, :, :, None]
          * w_cols[:, None, None, :]).reshape(S, nsplit * Kc)        # (S, nsplit*K)
  wstack = jnp.kron(jnp.eye(B, dtype=jnp.float32), wbig)             # (B*S, B*nsplit*K)
  bias_col = jnp.tile(jnp.repeat(params["conv_b"], nsplit), B)[:, None]
  wstack = jnp.concatenate([wstack, bias_col], axis=1).astype(jnp.bfloat16)

  bn_scale = params["bn_gamma"] / jnp.sqrt(params["bn_var"] + 1e-5)
  bn_shift = params["bn_beta"] - params["bn_mean"] * bn_scale
  cscale = jnp.tile(jnp.repeat(bn_scale, nsplit), B)[:, None].astype(jnp.float32)
  cshift = jnp.tile(jnp.repeat(bn_shift, nsplit), B)[:, None].astype(jnp.float32)

  # Static cross-batch block mask over score columns ordered (head, batch, key).
  row_b = jnp.repeat(jnp.arange(B), S)                               # (B*S,)
  col_b = jnp.tile(jnp.repeat(jnp.arange(B), S), H)                  # (H*B*S,)
  blockmask = jnp.where(row_b[:, None] == col_b[None, :],
                        0.0, -1e30).astype(jnp.float32)              # (B*S, H*B*S)

  # Head-block lane masks for the replicated K / [V|1] operands (f32: v5e VPU).
  head_of_row = jnp.repeat(jnp.arange(H), B * S)                     # (H*B*S,)
  head_of_lane = jnp.arange(D) // dh                                 # (D,)
  kmask = (head_of_row[:, None] == head_of_lane[None, :]).astype(jnp.float32)
  vmask = jnp.concatenate([kmask, kmask], axis=1)                    # (H*B*S, 2D)

  return dict(wstack=wstack, cscale=cscale, cshift=cshift,
              blockmask=blockmask, kmask=kmask, vmask=vmask)


# ----------------------------------------------------------------------------
# Forward pass (ImageEncoder.forward) -> minimal glue + one fused pallas_call
# ----------------------------------------------------------------------------
def image_encoder_forward(kernel_layers, ops, x, key_mask):
  kp = kernel_layers
  B, C, Hs, Ws = x.shape
  OH, OW = Hs // 2, Ws // 2
  P, Kc = OH * OW, C * 16
  D = kp["wo"].shape[-1]
  nsplit = P // D
  S = C * nsplit
  H = ops["kmask"].shape[0] // (B * S)
  L = kp["wqkv"].shape[0]

  # im2col (stride-2 4x4 windows) in ONE XLA op, regrouped lane-dense so the
  # kernel's first matmul directly yields the (B*S, D) token matrix; a ones row
  # is appended to carry the folded conv bias.
  patches = jax.lax.conv_general_dilated_patches(
      x, filter_shape=(4, 4), window_strides=(2, 2), padding=((1, 1), (1, 1)),
      dimension_numbers=("NCHW", "OIHW", "NCHW"))                    # (B, Kc, OH, OW)
  aflat = (patches.reshape(B, Kc, nsplit, D)
           .transpose(0, 2, 1, 3)
           .reshape(B * nsplit * Kc, D))
  aflat = jnp.concatenate([aflat, jnp.ones((1, D), aflat.dtype)],
                          axis=0).astype(jnp.bfloat16)               # (B*nsplit*Kc+1, D)

  # Per-call key-padding additive bias over score columns ordered (head, batch, key).
  keybias = jnp.tile(jnp.where(key_mask, -1e9, 0.0).astype(jnp.float32)
                     .reshape(1, B * S), (1, H))                     # (1, H*B*S)

  out2d = pl.pallas_call(
      functools.partial(fused_image_encoder_kernel, B=B, S=S, D=D, H=H, L=L),
      out_shape=jax.ShapeDtypeStruct((B * S, D), jnp.float32),
  )(aflat, ops["wstack"], ops["cscale"], ops["cshift"],
    ops["blockmask"], keybias, ops["kmask"], ops["vmask"],
    kp["wqkv"], kp["bqkv"], kp["wo"], kp["bo"], kp["ln1w"], kp["ln1b"],
    kp["w1"], kp["b1"], kp["w2"], kp["b2"], kp["ln2w"], kp["ln2b"])
  return out2d.reshape(B, S, D)


# ----------------------------------------------------------------------------
# Pure-JAX f32 reference (eval semantics) for a correctness check
# ----------------------------------------------------------------------------
def reference_forward(params, x, key_mask, *, embed_dim, nheads):
  B, C, _, _ = x.shape
  D, Hh = embed_dim, nheads
  dh = D // Hh
  y = jax.lax.conv_general_dilated(
      x, params["conv_w"], window_strides=(2, 2), padding=((1, 1), (1, 1)),
      dimension_numbers=("NCHW", "OIHW", "NCHW"))
  y = jnp.maximum(y + params["conv_b"].reshape(1, C, 1, 1), 0.0)
  bn_scale = params["bn_gamma"] / jnp.sqrt(params["bn_var"] + 1e-5)
  bn_shift = params["bn_beta"] - params["bn_mean"] * bn_scale
  y = y * bn_scale.reshape(1, C, 1, 1) + bn_shift.reshape(1, C, 1, 1)
  h = y.reshape(B, -1, D)
  S = h.shape[1]
  bias = jnp.where(key_mask, -1e9, 0.0).astype(jnp.float32)

  def layer_norm(a, w, b):
    mu = jnp.mean(a, axis=-1, keepdims=True)
    var = jnp.mean((a - mu) ** 2, axis=-1, keepdims=True)
    return (a - mu) * jax.lax.rsqrt(var + 1e-5) * w + b

  for lp in params["layers"]:
    qkv = h @ lp["wqkv"] + lp["bqkv"]
    q, k, v = qkv[..., :D], qkv[..., D:2 * D], qkv[..., 2 * D:]
    split = lambda t: t.reshape(B, S, Hh, dh).transpose(0, 2, 1, 3)
    qh = split(q) / jnp.sqrt(jnp.float32(dh))
    kh, vh = split(k), split(v)
    s = jnp.einsum("bhid,bhjd->bhij", qh, kh) + bias[:, None, None, :]
    p = jax.nn.softmax(s, axis=-1)
    ctx = jnp.einsum("bhij,bhjd->bhid", p, vh).transpose(0, 2, 1, 3).reshape(B, S, D)
    attn = ctx @ lp["wo"] + lp["bo"]
    h = layer_norm(h + attn, lp["ln1w"], lp["ln1b"])
    ff = jnp.maximum(h @ lp["w1"] + lp["b1"], 0.0) @ lp["w2"] + lp["b2"]
    h = layer_norm(h + ff, lp["ln2w"], lp["ln2b"])
  return h


if __name__ == "__main__":
  # small config consistent with the module: channels=4, embedding_dim=32,
  # nheads=4, dim_fc=64, num_layers=2; input 16x16 -> conv -> 8x8 -> seq=8
  B, C, Hx, Wx = 2, 4, 16, 16
  embed_dim, nheads, dim_fc, num_layers = 32, 4, 64, 2

  key = jax.random.PRNGKey(0)
  kx, kp = jax.random.split(key)
  x = jax.random.normal(kx, (B, C, Hx, Wx), jnp.float32)

  seq = (C * (Hx // 2) * (Wx // 2)) // embed_dim                     # = 8
  key_mask = jnp.zeros((B, seq), dtype=bool).at[1, seq - 1].set(True)

  params = init_params(kp, C, embed_dim, dim_fc, num_layers, nheads)
  ops = precompute_operands(params, batch=B, channels=C, height=Hx, width=Wx,
                            embed_dim=embed_dim, nheads=nheads)

  fwd = jax.jit(image_encoder_forward)
  out = jax.block_until_ready(fwd(params["kernel_layers"], ops, x, key_mask))
  assert out.shape == (B, seq, embed_dim)
  assert bool(jnp.all(jnp.isfinite(out)))

  ref = reference_forward(params, x, key_mask, embed_dim=embed_dim, nheads=nheads)
  err = float(jnp.max(jnp.abs(out - ref)))
  assert err < 0.15, f"kernel/reference mismatch: max abs err {err}"
  print("KERNEL_OK")
</pallas_src>

<mosaic_0001>
module attributes {stable_mosaic.version = 11 : i64} {
  func.func @fused_image_encoder_kernel(%arg0: memref<257x32xbf16, #tpu.memory_space<vmem>>, %arg1: memref<16x257xbf16, #tpu.memory_space<vmem>>, %arg2: memref<16x1xf32, #tpu.memory_space<vmem>>, %arg3: memref<16x1xf32, #tpu.memory_space<vmem>>, %arg4: memref<16x64xf32, #tpu.memory_space<vmem>>, %arg5: memref<1x64xf32, #tpu.memory_space<vmem>>, %arg6: memref<64x32xf32, #tpu.memory_space<vmem>>, %arg7: memref<64x64xf32, #tpu.memory_space<vmem>>, %arg8: memref<2x32x128xbf16, #tpu.memory_space<vmem>>, %arg9: memref<2x1x128xf32, #tpu.memory_space<vmem>>, %arg10: memref<2x32x32xbf16, #tpu.memory_space<vmem>>, %arg11: memref<2x1x32xf32, #tpu.memory_space<vmem>>, %arg12: memref<2x1x32xf32, #tpu.memory_space<vmem>>, %arg13: memref<2x1x32xf32, #tpu.memory_space<vmem>>, %arg14: memref<2x32x64xbf16, #tpu.memory_space<vmem>>, %arg15: memref<2x1x64xf32, #tpu.memory_space<vmem>>, %arg16: memref<2x64x32xbf16, #tpu.memory_space<vmem>>, %arg17: memref<2x1x32xf32, #tpu.memory_space<vmem>>, %arg18: memref<2x1x32xf32, #tpu.memory_space<vmem>>, %arg19: memref<2x1x32xf32, #tpu.memory_space<vmem>>, %arg20: memref<16x32xf32, #tpu.memory_space<vmem>>) attributes {dimension_semantics = [], scalar_prefetch = 0 : i64, scratch_operands = 0 : i64, tpu.core_type = #tpu.core_type<tc>} {
    %c0 = arith.constant 0 : index
    %c0_0 = arith.constant 0 : index
    %0 = vector.load %arg1[%c0, %c0_0] : memref<16x257xbf16, #tpu.memory_space<vmem>>, vector<16x257xbf16>
    %c0_1 = arith.constant 0 : index
    %c0_2 = arith.constant 0 : index
    %1 = vector.load %arg0[%c0_1, %c0_2] : memref<257x32xbf16, #tpu.memory_space<vmem>>, vector<257x32xbf16>
    %cst = arith.constant dense<0.000000e+00> : vector<16x32xf32>
    %2 = tpu.matmul %0, %1, %cst {dimension_numbers = #tpu.dot_dimension_numbers<[1], [0], [0], [1], [0, 0, 1, 1], [], []>} : vector<16x257xbf16>, vector<257x32xbf16>, vector<16x32xf32> -> vector<16x32xf32>
    %cst_3 = arith.constant 0.000000e+00 : f32
    %3 = vector.broadcast %cst_3 : f32 to vector<16x32xf32>
    %4 = arith.maximumf %2, %3 : vector<16x32xf32>
    %c0_4 = arith.constant 0 : index
    %c0_5 = arith.constant 0 : index
    %5 = vector.load %arg2[%c0_4, %c0_5] : memref<16x1xf32, #tpu.memory_space<vmem>>, vector<16x1xf32>
    %6 = vector.broadcast %5 : vector<16x1xf32> to vector<16x32xf32>
    %7 = arith.mulf %4, %6 : vector<16x32xf32>
    %c0_6 = arith.constant 0 : index
    %c0_7 = arith.constant 0 : index
    %8 = vector.load %arg3[%c0_6, %c0_7] : memref<16x1xf32, #tpu.memory_space<vmem>>, vector<16x1xf32>
    %9 = vector.broadcast %8 : vector<16x1xf32> to vector<16x32xf32>
    %10 = arith.addf %7, %9 : vector<16x32xf32>
    %c0_8 = arith.constant 0 : index
    %c0_9 = arith.constant 0 : index
    %11 = vector.load %arg4[%c0_8, %c0_9] : memref<16x64xf32, #tpu.memory_space<vmem>>, vector<16x64xf32>
    %c0_10 = arith.constant 0 : index
    %c0_11 = arith.constant 0 : index
    %12 = vector.load %arg5[%c0_10, %c0_11] : memref<1x64xf32, #tpu.memory_space<vmem>>, vector<1x64xf32>
    %13 = vector.broadcast %12 : vector<1x64xf32> to vector<16x64xf32>
    %14 = arith.addf %11, %13 : vector<16x64xf32>
    %c0_12 = arith.constant 0 : index
    %c0_13 = arith.constant 0 : index
    %15 = vector.load %arg6[%c0_12, %c0_13] : memref<64x32xf32, #tpu.memory_space<vmem>>, vector<64x32xf32>
    %c0_14 = arith.constant 0 : index
    %c0_15 = arith.constant 0 : index
    %16 = vector.load %arg7[%c0_14, %c0_15] : memref<64x64xf32, #tpu.memory_space<vmem>>, vector<64x64xf32>
    %17 = arith.truncf %10 : vector<16x32xf32> to vector<16x32xbf16>
    %c0_16 = arith.constant 0 : index
    %c0_17 = arith.constant 0 : index
    %c0_18 = arith.constant 0 : index
    %18 = vector.load %arg8[%c0_16, %c0_17, %c0_18] : memref<2x32x128xbf16, #tpu.memory_space<vmem>>, vector<1x32x128xbf16>
    %19 = vector.shape_cast %18 : vector<1x32x128xbf16> to vector<32x128xbf16>
    %cst_19 = arith.constant dense<0.000000e+00> : vector<16x128xf32>
    %20 = tpu.matmul %17, %19, %cst_19 {dimension_numbers = #tpu.dot_dimension_numbers<[1], [0], [0], [1], [0, 0, 1, 1], [], []>} : vector<16x32xbf16>, vector<32x128xbf16>, vector<16x128xf32> -> vector<16x128xf32>
    %c0_20 = arith.constant 0 : index
    %c0_21 = arith.constant 0 : index
    %c0_22 = arith.constant 0 : index
    %21 = vector.load %arg9[%c0_20, %c0_21, %c0_22] : memref<2x1x128xf32, #tpu.memory_space<vmem>>, vector<1x1x128xf32>
    %22 = vector.shape_cast %21 : vector<1x1x128xf32> to vector<1x128xf32>
    %23 = vector.broadcast %22 : vector<1x128xf32> to vector<16x128xf32>
    %24 = arith.addf %20, %23 : vector<16x128xf32>
    %25 = vector.extract_strided_slice %24 {offsets = [0, 0], sizes = [16, 32], strides = [1, 1]} : vector<16x128xf32> to vector<16x32xf32>
    %26 = vector.extract_strided_slice %24 {offsets = [0, 32], sizes = [16, 32], strides = [1, 1]} : vector<16x128xf32> to vector<16x32xf32>
    %27 = vector.extract_strided_slice %24 {offsets = [0, 64], sizes = [16, 64], strides = [1, 1]} : vector<16x128xf32> to vector<16x64xf32>
    %28 = vector.shape_cast %26 : vector<16x32xf32> to vector<1x16x32xf32>
    %29 = vector.shape_cast %28 : vector<1x16x32xf32> to vector<1x16x32xf32>
    %30 = vector.broadcast %29 : vector<1x16x32xf32> to vector<4x16x32xf32>
    %31 = vector.shape_cast %30 : vector<4x16x32xf32> to vector<64x32xf32>
    %32 = arith.mulf %31, %15 : vector<64x32xf32>
    %33 = arith.truncf %32 : vector<64x32xf32> to vector<64x32xbf16>
    %34 = vector.shape_cast %27 : vector<16x64xf32> to vector<1x16x64xf32>
    %35 = vector.shape_cast %34 : vector<1x16x64xf32> to vector<1x16x64xf32>
    %36 = vector.broadcast %35 : vector<1x16x64xf32> to vector<4x16x64xf32>
    %37 = vector.shape_cast %36 : vector<4x16x64xf32> to vector<64x64xf32>
    %38 = arith.mulf %37, %16 : vector<64x64xf32>
    %39 = arith.truncf %38 : vector<64x64xf32> to vector<64x64xbf16>
    %40 = arith.truncf %25 : vector<16x32xf32> to vector<16x32xbf16>
    %cst_23 = arith.constant dense<0.000000e+00> : vector<16x64xf32>
    %41 = tpu.matmul %40, %33, %cst_23 {dimension_numbers = #tpu.dot_dimension_numbers<[1], [1], [0], [0], [0, 0, 1, 0], [], []>} : vector<16x32xbf16>, vector<64x32xbf16>, vector<16x64xf32> -> vector<16x64xf32>
    %42 = arith.addf %41, %14 : vector<16x64xf32>
    %cst_24 = arith.constant dense<0xFF800000> : vector<16xf32>
    %43 = vector.multi_reduction <maximumf>, %42, %cst_24 [1] : vector<16x64xf32> to vector<16xf32>
    %44 = vector.shape_cast %43 : vector<16xf32> to vector<16x1xf32>
    %45 = vector.broadcast %44 : vector<16x1xf32> to vector<16x64xf32>
    %46 = arith.subf %42, %45 : vector<16x64xf32>
    %47 = math.exp %46 : vector<16x64xf32>
    %48 = arith.truncf %47 : vector<16x64xf32> to vector<16x64xbf16>
    %cst_25 = arith.constant dense<0.000000e+00> : vector<16x64xf32>
    %49 = tpu.matmul %48, %39, %cst_25 {dimension_numbers = #tpu.dot_dimension_numbers<[1], [0], [0], [1], [0, 0, 1, 1], [], []>} : vector<16x64xbf16>, vector<64x64xbf16>, vector<16x64xf32> -> vector<16x64xf32>
    %50 = vector.extract_strided_slice %49 {offsets = [0, 0], sizes = [16, 32], strides = [1, 1]} : vector<16x64xf32> to vector<16x32xf32>
    %51 = vector.extract_strided_slice %49 {offsets = [0, 32], sizes = [16, 32], strides = [1, 1]} : vector<16x64xf32> to vector<16x32xf32>
    %52 = tpu.reciprocal %51 {approx = true} : vector<16x32xf32> -> vector<16x32xf32>
    %53 = arith.mulf %50, %52 : vector<16x32xf32>
    %54 = arith.truncf %53 : vector<16x32xf32> to vector<16x32xbf16>
    %c0_26 = arith.constant 0 : index
    %c0_27 = arith.constant 0 : index
    %c0_28 = arith.constant 0 : index
    %55 = vector.load %arg10[%c0_26, %c0_27, %c0_28] : memref<2x32x32xbf16, #tpu.memory_space<vmem>>, vector<1x32x32xbf16>
    %56 = vector.shape_cast %55 : vector<1x32x32xbf16> to vector<32x32xbf16>
    %cst_29 = arith.constant dense<0.000000e+00> : vector<16x32xf32>
    %57 = tpu.matmul %54, %56, %cst_29 {dimension_numbers = #tpu.dot_dimension_numbers<[1], [0], [0], [1], [0, 0, 1, 1], [], []>} : vector<16x32xbf16>, vector<32x32xbf16>, vector<16x32xf32> -> vector<16x32xf32>
    %c0_30 = arith.constant 0 : index
    %c0_31 = arith.constant 0 : index
    %c0_32 = arith.constant 0 : index
    %58 = vector.load %arg11[%c0_30, %c0_31, %c0_32] : memref<2x1x32xf32, #tpu.memory_space<vmem>>, vector<1x1x32xf32>
    %59 = vector.shape_cast %58 : vector<1x1x32xf32> to vector<1x32xf32>
    %60 = vector.broadcast %59 : vector<1x32xf32> to vector<16x32xf32>
    %61 = arith.addf %57, %60 : vector<16x32xf32>
    %62 = arith.addf %10, %61 : vector<16x32xf32>
    %cst_33 = arith.constant dense<0.000000e+00> : vector<16xf32>
    %63 = vector.multi_reduction <add>, %62, %cst_33 [1] : vector<16x32xf32> to vector<16xf32>
    %64 = vector.shape_cast %63 : vector<16xf32> to vector<16x1xf32>
    %cst_34 = arith.constant 3.200000e+01 : f32
    %65 = vector.broadcast %cst_34 : f32 to vector<16x1xf32>
    %66 = arith.divf %64, %65 : vector<16x1xf32>
    %67 = vector.broadcast %66 : vector<16x1xf32> to vector<16x32xf32>
    %68 = arith.subf %62, %67 : vector<16x32xf32>
    %69 = arith.mulf %68, %68 : vector<16x32xf32>
    %cst_35 = arith.constant dense<0.000000e+00> : vector<16xf32>
    %70 = vector.multi_reduction <add>, %69, %cst_35 [1] : vector<16x32xf32> to vector<16xf32>
    %71 = vector.shape_cast %70 : vector<16xf32> to vector<16x1xf32>
    %cst_36 = arith.constant 3.200000e+01 : f32
    %72 = vector.broadcast %cst_36 : f32 to vector<16x1xf32>
    %73 = arith.divf %71, %72 : vector<16x1xf32>
    %74 = vector.broadcast %66 : vector<16x1xf32> to vector<16x32xf32>
    %75 = arith.subf %62, %74 : vector<16x32xf32>
    %cst_37 = arith.constant 9.99999974E-6 : f32
    %76 = vector.broadcast %cst_37 : f32 to vector<16x1xf32>
    %77 = arith.addf %73, %76 : vector<16x1xf32>
    %78 = math.rsqrt %77 : vector<16x1xf32>
    %79 = vector.broadcast %78 : vector<16x1xf32> to vector<16x32xf32>
    %80 = arith.mulf %75, %79 : vector<16x32xf32>
    %c0_38 = arith.constant 0 : index
    %c0_39 = arith.constant 0 : index
    %c0_40 = arith.constant 0 : index
    %81 = vector.load %arg12[%c0_38, %c0_39, %c0_40] : memref<2x1x32xf32, #tpu.memory_space<vmem>>, vector<1x1x32xf32>
    %82 = vector.shape_cast %81 : vector<1x1x32xf32> to vector<1x32xf32>
    %83 = vector.broadcast %82 : vector<1x32xf32> to vector<16x32xf32>
    %84 = arith.mulf %80, %83 : vector<16x32xf32>
    %c0_41 = arith.constant 0 : index
    %c0_42 = arith.constant 0 : index
    %c0_43 = arith.constant 0 : index
    %85 = vector.load %arg13[%c0_41, %c0_42, %c0_43] : memref<2x1x32xf32, #tpu.memory_space<vmem>>, vector<1x1x32xf32>
    %86 = vector.shape_cast %85 : vector<1x1x32xf32> to vector<1x32xf32>
    %87 = vector.broadcast %86 : vector<1x32xf32> to vector<16x32xf32>
    %88 = arith.addf %84, %87 : vector<16x32xf32>
    %89 = arith.truncf %88 : vector<16x32xf32> to vector<16x32xbf16>
    %c0_44 = arith.constant 0 : index
    %c0_45 = arith.constant 0 : index
    %c0_46 = arith.constant 0 : index
    %90 = vector.load %arg14[%c0_44, %c0_45, %c0_46] : memref<2x32x64xbf16, #tpu.memory_space<vmem>>, vector<1x32x64xbf16>
    %91 = vector.shape_cast %90 : vector<1x32x64xbf16> to vector<32x64xbf16>
    %cst_47 = arith.constant dense<0.000000e+00> : vector<16x64xf32>
    %92 = tpu.matmul %89, %91, %cst_47 {dimension_numbers = #tpu.dot_dimension_numbers<[1], [0], [0], [1], [0, 0, 1, 1], [], []>} : vector<16x32xbf16>, vector<32x64xbf16>, vector<16x64xf32> -> vector<16x64xf32>
    %c0_48 = arith.constant 0 : index
    %c0_49 = arith.constant 0 : index
    %c0_50 = arith.constant 0 : index
    %93 = vector.load %arg15[%c0_48, %c0_49, %c0_50] : memref<2x1x64xf32, #tpu.memory_space<vmem>>, vector<1x1x64xf32>
    %94 = vector.shape_cast %93 : vector<1x1x64xf32> to vector<1x64xf32>
    %95 = vector.broadcast %94 : vector<1x64xf32> to vector<16x64xf32>
    %96 = arith.addf %92, %95 : vector<16x64xf32>
    %cst_51 = arith.constant 0.000000e+00 : f32
    %97 = vector.broadcast %cst_51 : f32 to vector<16x64xf32>
    %98 = arith.maximumf %96, %97 : vector<16x64xf32>
    %99 = arith.truncf %98 : vector<16x64xf32> to vector<16x64xbf16>
    %c0_52 = arith.constant 0 : index
    %c0_53 = arith.constant 0 : index
    %c0_54 = arith.constant 0 : index
    %100 = vector.load %arg16[%c0_52, %c0_53, %c0_54] : memref<2x64x32xbf16, #tpu.memory_space<vmem>>, vector<1x64x32xbf16>
    %101 = vector.shape_cast %100 : vector<1x64x32xbf16> to vector<64x32xbf16>
    %cst_55 = arith.constant dense<0.000000e+00> : vector<16x32xf32>
    %102 = tpu.matmul %99, %101, %cst_55 {dimension_numbers = #tpu.dot_dimension_numbers<[1], [0], [0], [1], [0, 0, 1, 1], [], []>} : vector<16x64xbf16>, vector<64x32xbf16>, vector<16x32xf32> -> vector<16x32xf32>
    %c0_56 = arith.constant 0 : index
    %c0_57 = arith.constant 0 : index
    %c0_58 = arith.constant 0 : index
    %103 = vector.load %arg17[%c0_56, %c0_57, %c0_58] : memref<2x1x32xf32, #tpu.memory_space<vmem>>, vector<1x1x32xf32>
    %104 = vector.shape_cast %103 : vector<1x1x32xf32> to vector<1x32xf32>
    %105 = vector.broadcast %104 : vector<1x32xf32> to vector<16x32xf32>
    %106 = arith.addf %102, %105 : vector<16x32xf32>
    %107 = arith.addf %88, %106 : vector<16x32xf32>
    %cst_59 = arith.constant dense<0.000000e+00> : vector<16xf32>
    %108 = vector.multi_reduction <add>, %107, %cst_59 [1] : vector<16x32xf32> to vector<16xf32>
    %109 = vector.shape_cast %108 : vector<16xf32> to vector<16x1xf32>
    %cst_60 = arith.constant 3.200000e+01 : f32
    %110 = vector.broadcast %cst_60 : f32 to vector<16x1xf32>
    %111 = arith.divf %109, %110 : vector<16x1xf32>
    %112 = vector.broadcast %111 : vector<16x1xf32> to vector<16x32xf32>
    %113 = arith.subf %107, %112 : vector<16x32xf32>
    %114 = arith.mulf %113, %113 : vector<16x32xf32>
    %cst_61 = arith.constant dense<0.000000e+00> : vector<16xf32>
    %115 = vector.multi_reduction <add>, %114, %cst_61 [1] : vector<16x32xf32> to vector<16xf32>
    %116 = vector.shape_cast %115 : vector<16xf32> to vector<16x1xf32>
    %cst_62 = arith.constant 3.200000e+01 : f32
    %117 = vector.broadcast %cst_62 : f32 to vector<16x1xf32>
    %118 = arith.divf %116, %117 : vector<16x1xf32>
    %119 = vector.broadcast %111 : vector<16x1xf32> to vector<16x32xf32>
    %120 = arith.subf %107, %119 : vector<16x32xf32>
    %cst_63 = arith.constant 9.99999974E-6 : f32
    %121 = vector.broadcast %cst_63 : f32 to vector<16x1xf32>
    %122 = arith.addf %118, %121 : vector<16x1xf32>
    %123 = math.rsqrt %122 : vector<16x1xf32>
    %124 = vector.broadcast %123 : vector<16x1xf32> to vector<16x32xf32>
    %125 = arith.mulf %120, %124 : vector<16x32xf32>
    %c0_64 = arith.constant 0 : index
    %c0_65 = arith.constant 0 : index
    %c0_66 = arith.constant 0 : index
    %126 = vector.load %arg18[%c0_64, %c0_65, %c0_66] : memref<2x1x32xf32, #tpu.memory_space<vmem>>, vector<1x1x32xf32>
    %127 = vector.shape_cast %126 : vector<1x1x32xf32> to vector<1x32xf32>
    %128 = vector.broadcast %127 : vector<1x32xf32> to vector<16x32xf32>
    %129 = arith.mulf %125, %128 : vector<16x32xf32>
    %c0_67 = arith.constant 0 : index
    %c0_68 = arith.constant 0 : index
    %c0_69 = arith.constant 0 : index
    %130 = vector.load %arg19[%c0_67, %c0_68, %c0_69] : memref<2x1x32xf32, #tpu.memory_space<vmem>>, vector<1x1x32xf32>
    %131 = vector.shape_cast %130 : vector<1x1x32xf32> to vector<1x32xf32>
    %132 = vector.broadcast %131 : vector<1x32xf32> to vector<16x32xf32>
    %133 = arith.addf %129, %132 : vector<16x32xf32>
    %134 = arith.truncf %133 : vector<16x32xf32> to vector<16x32xbf16>
    %c1 = arith.constant 1 : index
    %c0_70 = arith.constant 0 : index
    %c0_71 = arith.constant 0 : index
    %135 = vector.load %arg8[%c1, %c0_70, %c0_71] : memref<2x32x128xbf16, #tpu.memory_space<vmem>>, vector<1x32x128xbf16>
    %136 = vector.shape_cast %135 : vector<1x32x128xbf16> to vector<32x128xbf16>
    %cst_72 = arith.constant dense<0.000000e+00> : vector<16x128xf32>
    %137 = tpu.matmul %134, %136, %cst_72 {dimension_numbers = #tpu.dot_dimension_numbers<[1], [0], [0], [1], [0, 0, 1, 1], [], []>} : vector<16x32xbf16>, vector<32x128xbf16>, vector<16x128xf32> -> vector<16x128xf32>
    %c1_73 = arith.constant 1 : index
    %c0_74 = arith.constant 0 : index
    %c0_75 = arith.constant 0 : index
    %138 = vector.load %arg9[%c1_73, %c0_74, %c0_75] : memref<2x1x128xf32, #tpu.memory_space<vmem>>, vector<1x1x128xf32>
    %139 = vector.shape_cast %138 : vector<1x1x128xf32> to vector<1x128xf32>
    %140 = vector.broadcast %139 : vector<1x128xf32> to vector<16x128xf32>
    %141 = arith.addf %137, %140 : vector<16x128xf32>
    %142 = vector.extract_strided_slice %141 {offsets = [0, 0], sizes = [16, 32], strides = [1, 1]} : vector<16x128xf32> to vector<16x32xf32>
    %143 = vector.extract_strided_slice %141 {offsets = [0, 32], sizes = [16, 32], strides = [1, 1]} : vector<16x128xf32> to vector<16x32xf32>
    %144 = vector.extract_strided_slice %141 {offsets = [0, 64], sizes = [16, 64], strides = [1, 1]} : vector<16x128xf32> to vector<16x64xf32>
    %145 = vector.shape_cast %143 : vector<16x32xf32> to vector<1x16x32xf32>
    %146 = vector.shape_cast %145 : vector<1x16x32xf32> to vector<1x16x32xf32>
    %147 = vector.broadcast %146 : vector<1x16x32xf32> to vector<4x16x32xf32>
    %148 = vector.shape_cast %147 : vector<4x16x32xf32> to vector<64x32xf32>
    %149 = arith.mulf %148, %15 : vector<64x32xf32>
    %150 = arith.truncf %149 : vector<64x32xf32> to vector<64x32xbf16>
    %151 = vector.shape_cast %144 : vector<16x64xf32> to vector<1x16x64xf32>
    %152 = vector.shape_cast %151 : vector<1x16x64xf32> to vector<1x16x64xf32>
    %153 = vector.broadcast %152 : vector<1x16x64xf32> to vector<4x16x64xf32>
    %154 = vector.shape_cast %153 : vector<4x16x64xf32> to vector<64x64xf32>
    %155 = arith.mulf %154, %16 : vector<64x64xf32>
    %156 = arith.truncf %155 : vector<64x64xf32> to vector<64x64xbf16>
    %157 = arith.truncf %142 : vector<16x32xf32> to vector<16x32xbf16>
    %cst_76 = arith.constant dense<0.000000e+00> : vector<16x64xf32>
    %158 = tpu.matmul %157, %150, %cst_76 {dimension_numbers = #tpu.dot_dimension_numbers<[1], [1], [0], [0], [0, 0, 1, 0], [], []>} : vector<16x32xbf16>, vector<64x32xbf16>, vector<16x64xf32> -> vector<16x64xf32>
    %159 = arith.addf %158, %14 : vector<16x64xf32>
    %cst_77 = arith.constant dense<0xFF800000> : vector<16xf32>
    %160 = vector.multi_reduction <maximumf>, %159, %cst_77 [1] : vector<16x64xf32> to vector<16xf32>
    %161 = vector.shape_cast %160 : vector<16xf32> to vector<16x1xf32>
    %162 = vector.broadcast %161 : vector<16x1xf32> to vector<16x64xf32>
    %163 = arith.subf %159, %162 : vector<16x64xf32>
    %164 = math.exp %163 : vector<16x64xf32>
    %165 = arith.truncf %164 : vector<16x64xf32> to vector<16x64xbf16>
    %cst_78 = arith.constant dense<0.000000e+00> : vector<16x64xf32>
    %166 = tpu.matmul %165, %156, %cst_78 {dimension_numbers = #tpu.dot_dimension_numbers<[1], [0], [0], [1], [0, 0, 1, 1], [], []>} : vector<16x64xbf16>, vector<64x64xbf16>, vector<16x64xf32> -> vector<16x64xf32>
    %167 = vector.extract_strided_slice %166 {offsets = [0, 0], sizes = [16, 32], strides = [1, 1]} : vector<16x64xf32> to vector<16x32xf32>
    %168 = vector.extract_strided_slice %166 {offsets = [0, 32], sizes = [16, 32], strides = [1, 1]} : vector<16x64xf32> to vector<16x32xf32>
    %169 = tpu.reciprocal %168 {approx = true} : vector<16x32xf32> -> vector<16x32xf32>
    %170 = arith.mulf %167, %169 : vector<16x32xf32>
    %171 = arith.truncf %170 : vector<16x32xf32> to vector<16x32xbf16>
    %c1_79 = arith.constant 1 : index
    %c0_80 = arith.constant 0 : index
    %c0_81 = arith.constant 0 : index
    %172 = vector.load %arg10[%c1_79, %c0_80, %c0_81] : memref<2x32x32xbf16, #tpu.memory_space<vmem>>, vector<1x32x32xbf16>
    %173 = vector.shape_cast %172 : vector<1x32x32xbf16> to vector<32x32xbf16>
    %cst_82 = arith.constant dense<0.000000e+00> : vector<16x32xf32>
    %174 = tpu.matmul %171, %173, %cst_82 {dimension_numbers = #tpu.dot_dimension_numbers<[1], [0], [0], [1], [0, 0, 1, 1], [], []>} : vector<16x32xbf16>, vector<32x32xbf16>, vector<16x32xf32> -> vector<16x32xf32>
    %c1_83 = arith.constant 1 : index
    %c0_84 = arith.constant 0 : index
    %c0_85 = arith.constant 0 : index
    %175 = vector.load %arg11[%c1_83, %c0_84, %c0_85] : memref<2x1x32xf32, #tpu.memory_space<vmem>>, vector<1x1x32xf32>
    %176 = vector.shape_cast %175 : vector<1x1x32xf32> to vector<1x32xf32>
    %177 = vector.broadcast %176 : vector<1x32xf32> to vector<16x32xf32>
    %178 = arith.addf %174, %177 : vector<16x32xf32>
    %179 = arith.addf %133, %178 : vector<16x32xf32>
    %cst_86 = arith.constant dense<0.000000e+00> : vector<16xf32>
    %180 = vector.multi_reduction <add>, %179, %cst_86 [1] : vector<16x32xf32> to vector<16xf32>
    %181 = vector.shape_cast %180 : vector<16xf32> to vector<16x1xf32>
    %cst_87 = arith.constant 3.200000e+01 : f32
    %182 = vector.broadcast %cst_87 : f32 to vector<16x1xf32>
    %183 = arith.divf %181, %182 : vector<16x1xf32>
    %184 = vector.broadcast %183 : vector<16x1xf32> to vector<16x32xf32>
    %185 = arith.subf %179, %184 : vector<16x32xf32>
    %186 = arith.mulf %185, %185 : vector<16x32xf32>
    %cst_88 = arith.constant dense<0.000000e+00> : vector<16xf32>
    %187 = vector.multi_reduction <add>, %186, %cst_88 [1] : vector<16x32xf32> to vector<16xf32>
    %188 = vector.shape_cast %187 : vector<16xf32> to vector<16x1xf32>
    %cst_89 = arith.constant 3.200000e+01 : f32
    %189 = vector.broadcast %cst_89 : f32 to vector<16x1xf32>
    %190 = arith.divf %188, %189 : vector<16x1xf32>
    %191 = vector.broadcast %183 : vector<16x1xf32> to vector<16x32xf32>
    %192 = arith.subf %179, %191 : vector<16x32xf32>
    %cst_90 = arith.constant 9.99999974E-6 : f32
    %193 = vector.broadcast %cst_90 : f32 to vector<16x1xf32>
    %194 = arith.addf %190, %193 : vector<16x1xf32>
    %195 = math.rsqrt %194 : vector<16x1xf32>
    %196 = vector.broadcast %195 : vector<16x1xf32> to vector<16x32xf32>
    %197 = arith.mulf %192, %196 : vector<16x32xf32>
    %c1_91 = arith.constant 1 : index
    %c0_92 = arith.constant 0 : index
    %c0_93 = arith.constant 0 : index
    %198 = vector.load %arg12[%c1_91, %c0_92, %c0_93] : memref<2x1x32xf32, #tpu.memory_space<vmem>>, vector<1x1x32xf32>
    %199 = vector.shape_cast %198 : vector<1x1x32xf32> to vector<1x32xf32>
    %200 = vector.broadcast %199 : vector<1x32xf32> to vector<16x32xf32>
    %201 = arith.mulf %197, %200 : vector<16x32xf32>
    %c1_94 = arith.constant 1 : index
    %c0_95 = arith.constant 0 : index
    %c0_96 = arith.constant 0 : index
    %202 = vector.load %arg13[%c1_94, %c0_95, %c0_96] : memref<2x1x32xf32, #tpu.memory_space<vmem>>, vector<1x1x32xf32>
    %203 = vector.shape_cast %202 : vector<1x1x32xf32> to vector<1x32xf32>
    %204 = vector.broadcast %203 : vector<1x32xf32> to vector<16x32xf32>
    %205 = arith.addf %201, %204 : vector<16x32xf32>
    %206 = arith.truncf %205 : vector<16x32xf32> to vector<16x32xbf16>
    %c1_97 = arith.constant 1 : index
    %c0_98 = arith.constant 0 : index
    %c0_99 = arith.constant 0 : index
    %207 = vector.load %arg14[%c1_97, %c0_98, %c0_99] : memref<2x32x64xbf16, #tpu.memory_space<vmem>>, vector<1x32x64xbf16>
    %208 = vector.shape_cast %207 : vector<1x32x64xbf16> to vector<32x64xbf16>
    %cst_100 = arith.constant dense<0.000000e+00> : vector<16x64xf32>
    %209 = tpu.matmul %206, %208, %cst_100 {dimension_numbers = #tpu.dot_dimension_numbers<[1], [0], [0], [1], [0, 0, 1, 1], [], []>} : vector<16x32xbf16>, vector<32x64xbf16>, vector<16x64xf32> -> vector<16x64xf32>
    %c1_101 = arith.constant 1 : index
    %c0_102 = arith.constant 0 : index
    %c0_103 = arith.constant 0 : index
    %210 = vector.load %arg15[%c1_101, %c0_102, %c0_103] : memref<2x1x64xf32, #tpu.memory_space<vmem>>, vector<1x1x64xf32>
    %211 = vector.shape_cast %210 : vector<1x1x64xf32> to vector<1x64xf32>
    %212 = vector.broadcast %211 : vector<1x64xf32> to vector<16x64xf32>
    %213 = arith.addf %209, %212 : vector<16x64xf32>
    %cst_104 = arith.constant 0.000000e+00 : f32
    %214 = vector.broadcast %cst_104 : f32 to vector<16x64xf32>
    %215 = arith.maximumf %213, %214 : vector<16x64xf32>
    %216 = arith.truncf %215 : vector<16x64xf32> to vector<16x64xbf16>
    %c1_105 = arith.constant 1 : index
    %c0_106 = arith.constant 0 : index
    %c0_107 = arith.constant 0 : index
    %217 = vector.load %arg16[%c1_105, %c0_106, %c0_107] : memref<2x64x32xbf16, #tpu.memory_space<vmem>>, vector<1x64x32xbf16>
    %218 = vector.shape_cast %217 : vector<1x64x32xbf16> to vector<64x32xbf16>
    %cst_108 = arith.constant dense<0.000000e+00> : vector<16x32xf32>
    %219 = tpu.matmul %216, %218, %cst_108 {dimension_numbers = #tpu.dot_dimension_numbers<[1], [0], [0], [1], [0, 0, 1, 1], [], []>} : vector<16x64xbf16>, vector<64x32xbf16>, vector<16x32xf32> -> vector<16x32xf32>
    %c1_109 = arith.constant 1 : index
    %c0_110 = arith.constant 0 : index
    %c0_111 = arith.constant 0 : index
    %220 = vector.load %arg17[%c1_109, %c0_110, %c0_111] : memref<2x1x32xf32, #tpu.memory_space<vmem>>, vector<1x1x32xf32>
    %221 = vector.shape_cast %220 : vector<1x1x32xf32> to vector<1x32xf32>
    %222 = vector.broadcast %221 : vector<1x32xf32> to vector<16x32xf32>
    %223 = arith.addf %219, %222 : vector<16x32xf32>
    %224 = arith.addf %205, %223 : vector<16x32xf32>
    %cst_112 = arith.constant dense<0.000000e+00> : vector<16xf32>
    %225 = vector.multi_reduction <add>, %224, %cst_112 [1] : vector<16x32xf32> to vector<16xf32>
    %226 = vector.shape_cast %225 : vector<16xf32> to vector<16x1xf32>
    %cst_113 = arith.constant 3.200000e+01 : f32
    %227 = vector.broadcast %cst_113 : f32 to vector<16x1xf32>
    %228 = arith.divf %226, %227 : vector<16x1xf32>
    %229 = vector.broadcast %228 : vector<16x1xf32> to vector<16x32xf32>
    %230 = arith.subf %224, %229 : vector<16x32xf32>
    %231 = arith.mulf %230, %230 : vector<16x32xf32>
    %cst_114 = arith.constant dense<0.000000e+00> : vector<16xf32>
    %232 = vector.multi_reduction <add>, %231, %cst_114 [1] : vector<16x32xf32> to vector<16xf32>
    %233 = vector.shape_cast %232 : vector<16xf32> to vector<16x1xf32>
    %cst_115 = arith.constant 3.200000e+01 : f32
    %234 = vector.broadcast %cst_115 : f32 to vector<16x1xf32>
    %235 = arith.divf %233, %234 : vector<16x1xf32>
    %236 = vector.broadcast %228 : vector<16x1xf32> to vector<16x32xf32>
    %237 = arith.subf %224, %236 : vector<16x32xf32>
    %cst_116 = arith.constant 9.99999974E-6 : f32
    %238 = vector.broadcast %cst_116 : f32 to vector<16x1xf32>
    %239 = arith.addf %235, %238 : vector<16x1xf32>
    %240 = math.rsqrt %239 : vector<16x1xf32>
    %241 = vector.broadcast %240 : vector<16x1xf32> to vector<16x32xf32>
    %242 = arith.mulf %237, %241 : vector<16x32xf32>
    %c1_117 = arith.constant 1 : index
    %c0_118 = arith.constant 0 : index
    %c0_119 = arith.constant 0 : index
    %243 = vector.load %arg18[%c1_117, %c0_118, %c0_119] : memref<2x1x32xf32, #tpu.memory_space<vmem>>, vector<1x1x32xf32>
    %244 = vector.shape_cast %243 : vector<1x1x32xf32> to vector<1x32xf32>
    %245 = vector.broadcast %244 : vector<1x32xf32> to vector<16x32xf32>
    %246 = arith.mulf %242, %245 : vector<16x32xf32>
    %c1_120 = arith.constant 1 : index
    %c0_121 = arith.constant 0 : index
    %c0_122 = arith.constant 0 : index
    %247 = vector.load %arg19[%c1_120, %c0_121, %c0_122] : memref<2x1x32xf32, #tpu.memory_space<vmem>>, vector<1x1x32xf32>
    %248 = vector.shape_cast %247 : vector<1x1x32xf32> to vector<1x32xf32>
    %249 = vector.broadcast %248 : vector<1x32xf32> to vector<16x32xf32>
    %250 = arith.addf %246, %249 : vector<16x32xf32>
    %c0_123 = arith.constant 0 : index
    %c0_124 = arith.constant 0 : index
    %251 = vector.load %arg20[%c0_123, %c0_124] : memref<16x32xf32, #tpu.memory_space<vmem>>, vector<16x32xf32>
    tpu.vector_store %arg20[%c0_123, %c0_124], %250 {strides = array<i32>} : memref<16x32xf32, #tpu.memory_space<vmem>>, vector<16x32xf32>,
    return
  }
}

</mosaic_0001>

<llo_original>
// kernel: image_encoder_forward.1
$region0: #{image_encoder_forward.1}
  #allocation0 [shape = 'u32[]', space=smem, size = 0x4, offset = 0x4, fixed_abs, tag = 'smem constant byte address 0x4 - core index']
  #allocation1 [shape = 'u32[144,128]{1,0:T(1,128)}', space=vmem, size = 0x12000, scoped, tag = 'internal scratch']
  %s0 = inlined_call_operand.vmem [shape: bf16[257,32], index: 0, kind: input, shape index: {}]
  %s1 = inlined_call_operand.vmem [shape: bf16[16,257], index: 1, kind: input, shape index: {}]
  %s2 = inlined_call_operand.vmem [shape: f32[16,1], index: 2, kind: input, shape index: {}]
  %s3 = inlined_call_operand.vmem [shape: f32[16,1], index: 3, kind: input, shape index: {}]
  %s4 = inlined_call_operand.vmem [shape: f32[16,64], index: 4, kind: input, shape index: {}]
  %s5 = inlined_call_operand.vmem [shape: f32[1,64], index: 5, kind: input, shape index: {}]
  %s6 = inlined_call_operand.vmem [shape: f32[64,32], index: 6, kind: input, shape index: {}]
  %s7 = inlined_call_operand.vmem [shape: f32[64,64], index: 7, kind: input, shape index: {}]
  %s8 = inlined_call_operand.vmem [shape: bf16[2,32,128], index: 8, kind: input, shape index: {}]
  %s9 = inlined_call_operand.vmem [shape: f32[2,1,128], index: 9, kind: input, shape index: {}]
  %s10 = inlined_call_operand.vmem [shape: bf16[2,32,32], index: 10, kind: input, shape index: {}]
  %s11 = inlined_call_operand.vmem [shape: f32[2,1,32], index: 11, kind: input, shape index: {}]
  %s12 = inlined_call_operand.vmem [shape: f32[2,1,32], index: 12, kind: input, shape index: {}]
  %s13 = inlined_call_operand.vmem [shape: f32[2,1,32], index: 13, kind: input, shape index: {}]
  %s14 = inlined_call_operand.vmem [shape: bf16[2,32,64], index: 14, kind: input, shape index: {}]
  %s15 = inlined_call_operand.vmem [shape: f32[2,1,64], index: 15, kind: input, shape index: {}]
  %s16 = inlined_call_operand.vmem [shape: bf16[2,64,32], index: 16, kind: input, shape index: {}]
  %s17 = inlined_call_operand.vmem [shape: f32[2,1,32], index: 17, kind: input, shape index: {}]
  %s18 = inlined_call_operand.vmem [shape: f32[2,1,32], index: 18, kind: input, shape index: {}]
  %s19 = inlined_call_operand.vmem [shape: f32[2,1,32], index: 19, kind: input, shape index: {}]
  %s20 = inlined_call_operand.hbm [shape: f32[16,32], index: 20, kind: output, shape index: {}]
  %s21 = sld [smem:[#allocation0]]
  $region90: #{image_encoder_forward.1} parent=0
    _
  %s23 = ssub.s32 1, %s21
  %s24 = scalar_select 0, %s23, %s21
  $region1: #{image_encoder_forward.1} parent=0
    #allocation2 [shape = 'u8[8192]{0}', space=vmem, size = 0x2000, scoped, tag = 'output window, operand 0, single buffered']
    #allocation3 [shape = 's32[1]{0}', space=sflag, size = 0x4, scoped, tag = 'scoped memory for image_encoder_forward.1']
    %25 = vsyncpa [#allocation3], 0
    // Predicated region
    $region2: #{image_encoder_forward.1} parent=1 // pred_check
      _
    $region3: #{image_encoder_forward.1} parent=1 // pred_check_branch
      %27 = sbr.rel (0) target = $region5
    $region4: #{image_encoder_forward.1} parent=1 // pred_region
      _
    $region5: #{image_encoder_forward.1} parent=1 // pred_fallthru
      _
    // Predicated region
    $region6: #{image_encoder_forward.1} parent=1 // pred_check
      _
    $region7: #{image_encoder_forward.1} parent=1 // pred_check_branch
      %29 = sbr.rel (0) target = $region9
    $region8: #{image_encoder_forward.1} parent=1 // pred_region
      _
    $region9: #{image_encoder_forward.1} parent=1 // pred_fallthru
      _
    // Predicated region
    $region10: #{image_encoder_forward.1} parent=1 // pred_check
      _
    $region11: #{image_encoder_forward.1} parent=1 // pred_check_branch
      %31 = sbr.rel (0) target = $region13
    $region12: #{image_encoder_forward.1} parent=1 // pred_region
      _
    $region13: #{image_encoder_forward.1} parent=1 // pred_fallthru
      _
    // Predicated region
    $region14: #{image_encoder_forward.1} parent=1 // pred_check
      _
    $region15: #{image_encoder_forward.1} parent=1 // pred_check_branch
      %33 = sbr.rel (0) target = $region17
    $region16: #{image_encoder_forward.1} parent=1 // pred_region
      _
    $region17: #{image_encoder_forward.1} parent=1 // pred_fallthru
      _
    // Predicated region
    $region18: #{image_encoder_forward.1} parent=1 // pred_check
      _
    $region19: #{image_encoder_forward.1} parent=1 // pred_check_branch
      %35 = sbr.rel (0) target = $region21
    $region20: #{image_encoder_forward.1} parent=1 // pred_region
      _
    $region21: #{image_encoder_forward.1} parent=1 // pred_fallthru
      _
    // Predicated region
    $region22: #{image_encoder_forward.1} parent=1 // pred_check
      _
    $region23: #{image_encoder_forward.1} parent=1 // pred_check_branch
      %37 = sbr.rel (0) target = $region25
    $region24: #{image_encoder_forward.1} parent=1 // pred_region
      _
    $region25: #{image_encoder_forward.1} parent=1 // pred_fallthru
      _
    // Predicated region
    $region26: #{image_encoder_forward.1} parent=1 // pred_check
      _
    $region27: #{image_encoder_forward.1} parent=1 // pred_check_branch
      %39 = sbr.rel (0) target = $region29
    $region28: #{image_encoder_forward.1} parent=1 // pred_region
      _
    $region29: #{image_encoder_forward.1} parent=1 // pred_fallthru
      _
    // Predicated region
    $region30: #{image_encoder_forward.1} parent=1 // pred_check
      _
    $region31: #{image_encoder_forward.1} parent=1 // pred_check_branch
      %41 = sbr.rel (0) target = $region33
    $region32: #{image_encoder_forward.1} parent=1 // pred_region
      _
    $region33: #{image_encoder_forward.1} parent=1 // pred_fallthru
      _
    // Predicated region
    $region34: #{image_encoder_forward.1} parent=1 // pred_check
      _
    $region35: #{image_encoder_forward.1} parent=1 // pred_check_branch
      %43 = sbr.rel (0) target = $region37
    $region36: #{image_encoder_forward.1} parent=1 // pred_region
      _
    $region37: #{image_encoder_forward.1} parent=1 // pred_fallthru
      _
    // Predicated region
    $region38: #{image_encoder_forward.1} parent=1 // pred_check
      _
    $region39: #{image_encoder_forward.1} parent=1 // pred_check_branch
      %45 = sbr.rel (0) target = $region41
    $region40: #{image_encoder_forward.1} parent=1 // pred_region
      _
    $region41: #{image_encoder_forward.1} parent=1 // pred_fallthru
      _
    // Predicated region
    $region42: #{image_encoder_forward.1} parent=1 // pred_check
      _
    $region43: #{image_encoder_forward.1} parent=1 // pred_check_branch
      %47 = sbr.rel (0) target = $region45
    $region44: #{image_encoder_forward.1} parent=1 // pred_region
      _
    $region45: #{image_encoder_forward.1} parent=1 // pred_fallthru
      _
    // Predicated region
    $region46: #{image_encoder_forward.1} parent=1 // pred_check
      _
    $region47: #{image_encoder_forward.1} parent=1 // pred_check_branch
      %49 = sbr.rel (0) target = $region49
    $region48: #{image_encoder_forward.1} parent=1 // pred_region
      _
    $region49: #{image_encoder_forward.1} parent=1 // pred_fallthru
      _
    // Predicated region
    $region50: #{image_encoder_forward.1} parent=1 // pred_check
      _
    $region51: #{image_encoder_forward.1} parent=1 // pred_check_branch
      %51 = sbr.rel (0) target = $region53
    $region52: #{image_encoder_forward.1} parent=1 // pred_region
      _
    $region53: #{image_encoder_forward.1} parent=1 // pred_fallthru
      _
    // Predicated region
    $region54: #{image_encoder_forward.1} parent=1 // pred_check
      _
    $region55: #{image_encoder_forward.1} parent=1 // pred_check_branch
      %53 = sbr.rel (0) target = $region57
    $region56: #{image_encoder_forward.1} parent=1 // pred_region
      _
    $region57: #{image_encoder_forward.1} parent=1 // pred_fallthru
      _
    // Predicated region
    $region58: #{image_encoder_forward.1} parent=1 // pred_check
      _
    $region59: #{image_encoder_forward.1} parent=1 // pred_check_branch
      %55 = sbr.rel (0) target = $region61
    $region60: #{image_encoder_forward.1} parent=1 // pred_region
      _
    $region61: #{image_encoder_forward.1} parent=1 // pred_fallthru
      _
    // Predicated region
    $region62: #{image_encoder_forward.1} parent=1 // pred_check
      _
    $region63: #{image_encoder_forward.1} parent=1 // pred_check_branch
      %57 = sbr.rel (0) target = $region65
    $region64: #{image_encoder_forward.1} parent=1 // pred_region
      _
    $region65: #{image_encoder_forward.1} parent=1 // pred_fallthru
      _
    // Predicated region
    $region66: #{image_encoder_forward.1} parent=1 // pred_check
      _
    $region67: #{image_encoder_forward.1} parent=1 // pred_check_branch
      %59 = sbr.rel (0) target = $region69
    $region68: #{image_encoder_forward.1} parent=1 // pred_region
      _
    $region69: #{image_encoder_forward.1} parent=1 // pred_fallthru
      _
    // Predicated region
    $region70: #{image_encoder_forward.1} parent=1 // pred_check
      _
    $region71: #{image_encoder_forward.1} parent=1 // pred_check_branch
      %61 = sbr.rel (0) target = $region73
    $region72: #{image_encoder_forward.1} parent=1 // pred_region
      _
    $region73: #{image_encoder_forward.1} parent=1 // pred_fallthru
      _
    // Predicated region
    $region74: #{image_encoder_forward.1} parent=1 // pred_check
      _
    $region75: #{image_encoder_forward.1} parent=1 // pred_check_branch
      %63 = sbr.rel (0) target = $region77
    $region76: #{image_encoder_forward.1} parent=1 // pred_region
      _
    $region77: #{image_encoder_forward.1} parent=1 // pred_fallthru
      _
    // Predicated region
    $region78: #{image_encoder_forward.1} parent=1 // pred_check
      _
    $region79: #{image_encoder_forward.1} parent=1 // pred_check_branch
      %65 = sbr.rel (0) target = $region81
    $region80: #{image_encoder_forward.1} parent=1 // pred_region
      _
    $region81: #{image_encoder_forward.1} parent=1 // pred_fallthru
      _
    %v67 = vld [vmem:[%s1] sm:$0xff]
    %v68 = vld [vmem:[%s1 + $0x8] sm:$0xf]
    %v69 = vld [vmem:[%s1 + $0xc] sm:$0xff]
    %v70 = vld [vmem:[%s1 + $0x14] sm:$0xf]
    %v71 = vld [vmem:[%s0] sm:$0xf]
    %v72 = vld [vmem:[%s0 + $0x4] sm:$0xf]
    %v73 = vld [vmem:[%s0 + $0x8] sm:$0xf]
    %v74 = vld [vmem:[%s0 + $0xc] sm:$0xf]
    %v75 = vld [vmem:[%s0 + $0x10] sm:$0xf]
    %v76 = vld [vmem:[%s0 + $0x14] sm:$0xf]
    %v77 = vld [vmem:[%s0 + $0x18] sm:$0xf]
    %v78 = vld [vmem:[%s0 + $0x1c] sm:$0xf]
    %v79 = vld [vmem:[%s0 + $0x20] sm:$0xf]
    %v80 = vld [vmem:[%s0 + $0x24] sm:$0xf]
    %v81 = vld [vmem:[%s0 + $0x28] sm:$0xf]
    %v82 = vld [vmem:[%s0 + $0x2c] sm:$0xf]
    %v83 = vld [vmem:[%s0 + $0x30] sm:$0xf]
    %v84 = vld [vmem:[%s0 + $0x34] sm:$0xf]
    %v85 = vld [vmem:[%s0 + $0x38] sm:$0xf]
    %v86 = vld [vmem:[%s0 + $0x3c] sm:$0xf]
    %v87 = vld [vmem:[%s0 + $0x40] sm:$0xf]
    %v88 = vld [vmem:[%s0 + $0x44] sm:$0xf]
    %v89 = vld [vmem:[%s0 + $0x48] sm:$0xf]
    %v90 = vld [vmem:[%s0 + $0x4c] sm:$0xf]
    %v91 = vld [vmem:[%s0 + $0x50] sm:$0xf]
    %v92 = vld [vmem:[%s0 + $0x54] sm:$0xf]
    %v93 = vld [vmem:[%s0 + $0x58] sm:$0xf]
    %v94 = vld [vmem:[%s0 + $0x5c] sm:$0xf]
    %v95 = vld [vmem:[%s0 + $0x60] sm:$0xf]
    %v96 = vld [vmem:[%s0 + $0x64] sm:$0xf]
    %v97 = vld [vmem:[%s0 + $0x68] sm:$0xf]
    %v98 = vld [vmem:[%s0 + $0x6c] sm:$0xf]
    %v99 = vld [vmem:[%s0 + $0x70] sm:$0xf]
    %v100 = vld [vmem:[%s0 + $0x74] sm:$0xf]
    %v101 = vld [vmem:[%s0 + $0x78] sm:$0xf]
    %v102 = vld [vmem:[%s0 + $0x7c] sm:$0xf]
    %v103 = vld [vmem:[%s0 + $0x80] sm:$0x1]
    %v108 = vunpack.c.l.b16 %v67
    %v109 = vunpack.c.h.b16 %v67
    %v110 = vunpack.c.l.b16 %v68
    %v111 = vunpack.c.l.b16 %v69
    %v112 = vunpack.c.h.b16 %v69
    %v113 = vunpack.c.l.b16 %v70
    %v114 = vpack.c.b16 %v111, %v108
    %v115 = vpack.c.b16 %v112, %v109
    %v116 = vpack.c.b16 %v113, %v110
    %v152 = vunpack.c.l.b16 %v71
    %v153 = vunpack.c.l.b16 %v72
    %v154 = vunpack.c.l.b16 %v73
    %v155 = vunpack.c.l.b16 %v74
    %v156 = vunpack.c.l.b16 %v75
    %v157 = vunpack.c.l.b16 %v76
    %v158 = vunpack.c.l.b16 %v77
    %v159 = vunpack.c.l.b16 %v78
    %v160 = vunpack.c.l.b16 %v79
    %v161 = vunpack.c.l.b16 %v80
    %v162 = vunpack.c.l.b16 %v81
    %v163 = vunpack.c.l.b16 %v82
    %v164 = vunpack.c.l.b16 %v83
    %v165 = vunpack.c.l.b16 %v84
    %v166 = vunpack.c.l.b16 %v85
    %v167 = vunpack.c.l.b16 %v86
    %v168 = vunpack.c.l.b16 %v87
    %v169 = vunpack.c.l.b16 %v88
    %v170 = vunpack.c.l.b16 %v89
    %v171 = vunpack.c.l.b16 %v90
    %v172 = vunpack.c.l.b16 %v91
    %v173 = vunpack.c.l.b16 %v92
    %v174 = vunpack.c.l.b16 %v93
    %v175 = vunpack.c.l.b16 %v94
    %v176 = vunpack.c.l.b16 %v95
    %v177 = vunpack.c.l.b16 %v96
    %v178 = vunpack.c.l.b16 %v97
    %v179 = vunpack.c.l.b16 %v98
    %v180 = vunpack.c.l.b16 %v99
    %v181 = vunpack.c.l.b16 %v100
    %v182 = vunpack.c.l.b16 %v101
    %v183 = vunpack.c.l.b16 %v102
    %v184 = vunpack.c.l.b16 %v103
    %v185 = vpack.c.b16 %v153, %v152
    %v186 = vpack.c.b16 %v155, %v154
    %v187 = vpack.c.b16 %v157, %v156
    %v188 = vpack.c.b16 %v159, %v158
    %v189 = vpack.c.b16 %v161, %v160
    %v190 = vpack.c.b16 %v163, %v162
    %v191 = vpack.c.b16 %v165, %v164
    %v192 = vpack.c.b16 %v167, %v166
    %v193 = vpack.c.b16 %v169, %v168
    %v194 = vpack.c.b16 %v171, %v170
    %v195 = vpack.c.b16 %v173, %v172
    %v196 = vpack.c.b16 %v175, %v174
    %v197 = vpack.c.b16 %v177, %v176
    %v198 = vpack.c.b16 %v179, %v178
    %v199 = vpack.c.b16 %v181, %v180
    %v200 = vpack.c.b16 %v183, %v182
    %v201 = vpack.c.b16 %v184, %v184
    %vm218 = vcmask 7168
    %v220 = vsel %vm218, %v116, 0
    %vm222 = vcmask 1040384
    %v223 = vsel 0, 4294967295, 65535
    %v224 = vsel %vm222, %v223, 0
    %v226 = vand.u32 %v201, %v224
    %228 = vmatprep.subr.bf16.mxu0 0
    %229 = vmatpush1.bf16.msra.mxu0 %v185
    %230 = vmatprep.subr.bf16.mxu0 0
    %231 = vmatpush1.bf16.msra.mxu0 %v186
    %232 = vmatprep.subr.bf16.mxu0 0
    %233 = vmatpush1.bf16.msra.mxu0 %v187
    %234 = vmatprep.subr.bf16.mxu0 0
    %235 = vmatpush1.bf16.msra.mxu0 %v188
    %236 = vmatprep.subr.bf16.mxu0 0
    %237 = vmatpush1.bf16.msra.mxu0 %v189
    %238 = vmatprep.subr.bf16.mxu0 0
    %239 = vmatpush1.bf16.msra.mxu0 %v190
    %240 = vmatprep.subr.bf16.mxu0 0
    %241 = vmatpush1.bf16.msra.mxu0 %v191
    %242 = vmatprep.subr.bf16.mxu0 0
    %243 = vmatpush1.bf16.msra.mxu0 %v192
    %244 = vmatprep.subr.bf16.mxu0 0
    %245 = vmatpush1.bf16.msra.mxu0 %v193
    %246 = vmatprep.subr.bf16.mxu0 0
    %247 = vmatpush1.bf16.msra.mxu0 %v194
    %248 = vmatprep.subr.bf16.mxu0 0
    %249 = vmatpush1.bf16.msra.mxu0 %v195
    %250 = vmatprep.subr.bf16.mxu0 0
    %251 = vmatpush1.bf16.msra.mxu0 %v196
    %252 = vmatprep.subr.bf16.mxu0 0
    %253 = vmatpush1.bf16.msra.mxu0 %v197
    %254 = vmatprep.subr.bf16.mxu0 0
    %255 = vmatpush1.bf16.msra.mxu0 %v198
    %256 = vmatprep.subr.bf16.mxu0 0
    %257 = vmatpush1.bf16.msra.mxu0 %v199
    %258 = vmatprep.subr.bf16.mxu0 0
    %259 = vmatpush1.bf16.msra.mxu0 %v200
    %260 = vmatprep.mubr.bf16.mxu0 %v115
    %261 = vmatmul.mubr.bf16.gmra.mrb[0].mxu0 %v114
    %v262 = vpop.f32.mrb[0].mxu0
    %v263 = vadd.f32 0.0, %v262
    %v264 = vpop.f32.mrb[0].mxu0
    %v265 = vpop.f32.mrb[0].mxu0
    %v266 = vadd.f32 0.0, %v265
    %v267 = vpop.f32.mrb[0].mxu0
    %268 = vdwg.mxu0
    %269 = vmatprep.subr.bf16.mxu0 0
    %270 = vmatpush1.bf16.msra.mxu0 %v226
    %271 = vmatprep.subr.bf16.mxu0 0
    %272 = vmatpush1.bf16.msra.mxu0 0
    %273 = vmatprep.subr.bf16.mxu0 0
    %274 = vmatpush1.bf16.msra.mxu0 0
    %275 = vmatprep.subr.bf16.mxu0 0
    %276 = vmatpush1.bf16.msra.mxu0 0
    %277 = vmatprep.subr.bf16.mxu0 0
    %278 = vmatpush1.bf16.msra.mxu0 0
    %279 = vmatprep.subr.bf16.mxu0 0
    %280 = vmatpush1.bf16.msra.mxu0 0
    %281 = vmatprep.subr.bf16.mxu0 0
    %282 = vmatpush1.bf16.msra.mxu0 0
    %283 = vmatprep.subr.bf16.mxu0 0
    %284 = vmatpush1.bf16.msra.mxu0 0
    %285 = vmatprep.subr.bf16.mxu0 0
    %286 = vmatpush1.bf16.msra.mxu0 0
    %287 = vmatprep.subr.bf16.mxu0 0
    %288 = vmatpush1.bf16.msra.mxu0 0
    %289 = vmatprep.subr.bf16.mxu0 0
    %290 = vmatpush1.bf16.msra.mxu0 0
    %291 = vmatprep.subr.bf16.mxu0 0
    %292 = vmatpush1.bf16.msra.mxu0 0
    %293 = vmatprep.subr.bf16.mxu0 0
    %294 = vmatpush1.bf16.msra.mxu0 0
    %295 = vmatprep.subr.bf16.mxu0 0
    %296 = vmatpush1.bf16.msra.mxu0 0
    %297 = vmatprep.subr.bf16.mxu0 0
    %298 = vmatpush1.bf16.msra.mxu0 0
    %299 = vmatprep.subr.bf16.mxu0 0
    %300 = vmatpush1.bf16.msra.mxu0 0
    %301 = vmatprep.mubr.bf16.mxu0 0
    %302 = vmatmul.mubr.bf16.gmra.mrb[0].mxu0 %v220
    %v303 = vpop.f32.mrb[0].mxu0
    %v304 = vadd.f32 %v263, %v303
    %v305 = vpop.f32.mrb[0].mxu0
    %v306 = vpop.f32.mrb[0].mxu0
    %v307 = vadd.f32 %v266, %v306
    %v308 = vpop.f32.mrb[0].mxu0
    %309 = vdwg.mxu0
    %v310 = vmax.f32 %v304, 0.0
    %v311 = vmax.f32 %v307, 0.0
    %v312 = vld [vmem:[%s2] sm:$0xff]
    %v313 = vld [vmem:[%s2 + $0x8] sm:$0xff]
    %315 = vset.pattern.permute.xlu0 0
    %316 = vperm.xlu0 %315, %v312
    %v317 = vpop.permute.xlu0 %316
    %320 = vset.pattern.permute.xlu0 0
    %321 = vperm.xlu0 %320, %v313
    %v322 = vpop.permute.xlu0 %321
    %v324 = vmul.f32 %v310, %v317
    %v325 = vmul.f32 %v311, %v322
    %v326 = vld [vmem:[%s3] sm:$0xff]
    %v327 = vld [vmem:[%s3 + $0x8] sm:$0xff]
    %329 = vset.pattern.permute.xlu0 0
    %330 = vperm.xlu0 %329, %v326
    %v331 = vpop.permute.xlu0 %330
    %334 = vset.pattern.permute.xlu0 0
    %335 = vperm.xlu0 %334, %v327
    %v336 = vpop.permute.xlu0 %335
    %v338 = vadd.f32 %v324, %v331
    %v339 = vadd.f32 %v325, %v336
    %v340 = vld [vmem:[%s4] sm:$0xff]
    %v341 = vld [vmem:[%s4 + $0x8] sm:$0xff]
    %v342 = vld [vmem:[%s5] sm:$0x1]
    %v344 = vlaneseq
    %v345 = vshrl.u32 %v344, 7
    %v346 = vsub.s32 0, %v345
    %v347 = vrot.slane %v342, %v346
    %v349 = vadd.f32 %v340, %v347
    %v350 = vadd.f32 %v341, %v347
    %v351 = vld [vmem:[%s6] sm:$0xff]
    %v352 = vld [vmem:[%s6 + $0x8] sm:$0xff]
    %v353 = vld [vmem:[%s6 + $0x10] sm:$0xff]
    %v354 = vld [vmem:[%s6 + $0x18] sm:$0xff]
    %v355 = vld [vmem:[%s6 + $0x20] sm:$0xff]
    %v356 = vld [vmem:[%s6 + $0x28] sm:$0xff]
    %v357 = vld [vmem:[%s6 + $0x30] sm:$0xff]
    %v358 = vld [vmem:[%s6 + $0x38] sm:$0xff]
    %v359 = vld [vmem:[%s7] sm:$0xff]
    %v360 = vld [vmem:[%s7 + $0x8] sm:$0xff]
    %v361 = vld [vmem:[%s7 + $0x10] sm:$0xff]
    %v362 = vld [vmem:[%s7 + $0x18] sm:$0xff]
    %v363 = vld [vmem:[%s7 + $0x20] sm:$0xff]
    %v364 = vld [vmem:[%s7 + $0x28] sm:$0xff]
    %v365 = vld [vmem:[%s7 + $0x30] sm:$0xff]
    %v366 = vld [vmem:[%s7 + $0x38] sm:$0xff]
    %v367 = vpack.c.bf16 %v339, %v338
    %v368 = vld [vmem:[%s8] sm:$0xf]
    %v369 = vld [vmem:[%s8 + $0x4] sm:$0xf]
    %v370 = vld [vmem:[%s8 + $0x8] sm:$0xf]
    %v371 = vld [vmem:[%s8 + $0xc] sm:$0xf]
    %v372 = vld [vmem:[%s9] sm:$0x1]
    %v374 = vlaneseq
    %v375 = vshrl.u32 %v374, 7
    %v376 = vsub.s32 0, %v375
    %v377 = vrot.slane %v372, %v376
    %v383 = vunpack.c.l.b16 %v368
    %v384 = vunpack.c.l.b16 %v369
    %v385 = vunpack.c.l.b16 %v370
    %v386 = vunpack.c.l.b16 %v371
    %v387 = vpack.c.b16 %v384, %v383
    %v388 = vpack.c.b16 %v386, %v385
    %vm391 = vcmask 261120
    %v393 = vsel %vm391, %v367, 0
    %395 = vmatprep.subr.bf16.mxu0 0
    %396 = vmatpush1.bf16.msra.mxu0 %v387
    %397 = vmatprep.subr.bf16.mxu0 0
    %398 = vmatpush1.bf16.msra.mxu0 %v388
    %399 = vmatprep.subr.bf16.mxu0 0
    %400 = vmatpush1.bf16.msra.mxu0 0
    %401 = vmatprep.subr.bf16.mxu0 0
    %402 = vmatpush1.bf16.msra.mxu0 0
    %403 = vmatprep.subr.bf16.mxu0 0
    %404 = vmatpush1.bf16.msra.mxu0 0
    %405 = vmatprep.subr.bf16.mxu0 0
    %406 = vmatpush1.bf16.msra.mxu0 0
    %407 = vmatprep.subr.bf16.mxu0 0
    %408 = vmatpush1.bf16.msra.mxu0 0
    %409 = vmatprep.subr.bf16.mxu0 0
    %410 = vmatpush1.bf16.msra.mxu0 0
    %411 = vmatprep.subr.bf16.mxu0 0
    %412 = vmatpush1.bf16.msra.mxu0 0
    %413 = vmatprep.subr.bf16.mxu0 0
    %414 = vmatpush1.bf16.msra.mxu0 0
    %415 = vmatprep.subr.bf16.mxu0 0
    %416 = vmatpush1.bf16.msra.mxu0 0
    %417 = vmatprep.subr.bf16.mxu0 0
    %418 = vmatpush1.bf16.msra.mxu0 0
    %419 = vmatprep.subr.bf16.mxu0 0
    %420 = vmatpush1.bf16.msra.mxu0 0
    %421 = vmatprep.subr.bf16.mxu0 0
    %422 = vmatpush1.bf16.msra.mxu0 0
    %423 = vmatprep.subr.bf16.mxu0 0
    %424 = vmatpush1.bf16.msra.mxu0 0
    %425 = vmatprep.subr.bf16.mxu0 0
    %426 = vmatpush1.bf16.msra.mxu0 0
    %427 = vmatprep.mubr.bf16.mxu0 0
    %428 = vmatmul.mubr.bf16.gmra.mrb[0].mxu0 %v393
    %v429 = vpop.f32.mrb[0].mxu0
    %v430 = vadd.f32 %v377, %v429
    %v431 = vpop.f32.mrb[0].mxu0
    %v432 = vpop.f32.mrb[0].mxu0
    %v433 = vadd.f32 %v377, %v432
    %v434 = vpop.f32.mrb[0].mxu0
    %435 = vdwg.mxu0
    %444 = vrot.lane.b32.xlu0 %v351, 32
    %v445 = vpop.permute.xlu0 %444
    %446 = vrot.lane.b32.xlu0 %v352, 32
    %v447 = vpop.permute.xlu0 %446
    %448 = vrot.lane.b32.xlu0 %v353, 32
    %v449 = vpop.permute.xlu0 %448
    %450 = vrot.lane.b32.xlu0 %v354, 32
    %v451 = vpop.permute.xlu0 %450
    %452 = vrot.lane.b32.xlu0 %v355, 32
    %v453 = vpop.permute.xlu0 %452
    %454 = vrot.lane.b32.xlu0 %v356, 32
    %v455 = vpop.permute.xlu0 %454
    %456 = vrot.lane.b32.xlu0 %v357, 32
    %v457 = vpop.permute.xlu0 %456
    %458 = vrot.lane.b32.xlu0 %v358, 32
    %v459 = vpop.permute.xlu0 %458
    %v468 = vmul.f32 %v430, %v445
    %v469 = vmul.f32 %v433, %v447
    %v470 = vmul.f32 %v430, %v449
    %v471 = vmul.f32 %v433, %v451
    %v472 = vmul.f32 %v430, %v453
    %v473 = vmul.f32 %v433, %v455
    %v474 = vmul.f32 %v430, %v457
    %v475 = vmul.f32 %v433, %v459
    %v476 = vpack.c.bf16 %v469, %v468
    %v477 = vpack.c.bf16 %v471, %v470
    %v478 = vpack.c.bf16 %v473, %v472
    %v479 = vpack.c.bf16 %v475, %v474
    %488 = vrot.lane.b32.xlu0 %v359, 64
    %v489 = vpop.permute.xlu0 %488
    %490 = vrot.lane.b32.xlu0 %v360, 64
    %v491 = vpop.permute.xlu0 %490
    %492 = vrot.lane.b32.xlu0 %v361, 64
    %v493 = vpop.permute.xlu0 %492
    %494 = vrot.lane.b32.xlu0 %v362, 64
    %v495 = vpop.permute.xlu0 %494
    %496 = vrot.lane.b32.xlu0 %v363, 64
    %v497 = vpop.permute.xlu0 %496
    %498 = vrot.lane.b32.xlu0 %v364, 64
    %v499 = vpop.permute.xlu0 %498
    %500 = vrot.lane.b32.xlu0 %v365, 64
    %v501 = vpop.permute.xlu0 %500
    %502 = vrot.lane.b32.xlu0 %v366, 64
    %v503 = vpop.permute.xlu0 %502
    %v512 = vmul.f32 %v430, %v489
    %v513 = vmul.f32 %v433, %v491
    %v514 = vmul.f32 %v430, %v493
    %v515 = vmul.f32 %v433, %v495
    %v516 = vmul.f32 %v430, %v497
    %v517 = vmul.f32 %v433, %v499
    %v518 = vmul.f32 %v430, %v501
    %v519 = vmul.f32 %v433, %v503
    %v520 = vpack.c.bf16 %v513, %v512
    %v521 = vpack.c.bf16 %v515, %v514
    %v522 = vpack.c.bf16 %v517, %v516
    %v523 = vpack.c.bf16 %v519, %v518
    %v524 = vpack.c.bf16 %v433, %v430
    %529 = vrot.lane.b32.xlu0 %v476, 96
    %v530 = vpop.permute.xlu0 %529
    %531 = vrot.lane.b32.xlu0 %v477, 96
    %v532 = vpop.permute.xlu0 %531
    %533 = vrot.lane.b32.xlu0 %v478, 96
    %v534 = vpop.permute.xlu0 %533
    %535 = vrot.lane.b32.xlu0 %v479, 96
    %v536 = vpop.permute.xlu0 %535
    %v538 = vsel %vm391, %v524, 0
    %v541 = vsel %vm391, %v530, 0
    %v544 = vsel %vm391, %v532, 0
    %v547 = vsel %vm391, %v534, 0
    %v550 = vsel %vm391, %v536, 0
    %552 = vmatprep.subr.bf16.mxu0 0
    %553 = vmatpush1.bf16.xpose.msra.mxu0 %v541
    %554 = vmatprep.subr.bf16.mxu0 0
    %555 = vmatpush1.bf16.xpose.msra.mxu0 %v544
    %556 = vmatprep.subr.bf16.mxu0 0
    %557 = vmatpush1.bf16.xpose.msra.mxu0 %v547
    %558 = vmatprep.subr.bf16.mxu0 0
    %559 = vmatpush1.bf16.xpose.msra.mxu0 %v550
    %560 = vmatprep.subr.bf16.mxu0 0
    %561 = vmatpush1.bf16.xpose.msra.mxu0 0
    %562 = vmatprep.subr.bf16.mxu0 0
    %563 = vmatpush1.bf16.xpose.msra.mxu0 0
    %564 = vmatprep.subr.bf16.mxu0 0
    %565 = vmatpush1.bf16.xpose.msra.mxu0 0
    %566 = vmatprep.subr.bf16.mxu0 0
    %567 = vmatpush1.bf16.xpose.msra.mxu0 0
    %568 = vmatprep.subr.bf16.mxu0 0
    %569 = vmatpush1.bf16.xpose.msra.mxu0 0
    %570 = vmatprep.subr.bf16.mxu0 0
    %571 = vmatpush1.bf16.xpose.msra.mxu0 0
    %572 = vmatprep.subr.bf16.mxu0 0
    %573 = vmatpush1.bf16.xpose.msra.mxu0 0
    %574 = vmatprep.subr.bf16.mxu0 0
    %575 = vmatpush1.bf16.xpose.msra.mxu0 0
    %576 = vmatprep.subr.bf16.mxu0 0
    %577 = vmatpush1.bf16.xpose.msra.mxu0 0
    %578 = vmatprep.subr.bf16.mxu0 0
    %579 = vmatpush1.bf16.xpose.msra.mxu0 0
    %580 = vmatprep.subr.bf16.mxu0 0
    %581 = vmatpush1.bf16.xpose.msra.mxu0 0
    %582 = vmatprep.subr.bf16.mxu0 0
    %583 = vmatpush1.bf16.xpose.msra.mxu0 0
    %584 = vmatprep.mubr.bf16.mxu0 0
    %585 = vmatmul.mubr.bf16.gmra.mrb[0].mxu0 %v538
    %v586 = vpop.f32.mrb[0].mxu0
    %v587 = vadd.f32 %v349, %v586
    %v588 = vpop.f32.mrb[0].mxu0
    %v589 = vpop.f32.mrb[0].mxu0
    %v590 = vadd.f32 %v350, %v589
    %v591 = vpop.f32.mrb[0].mxu0
    %592 = vdwg.mxu0
    %vm593 = vcmask 523264
    %v594 = vsel %vm593, %v587, -inf
    %595 = vmax.xlane.f32.xlu0 %v594
    %v596 = vpop.xlane.xlu0 %595
    %v597 = vsel %vm593, %v590, -inf
    %598 = vmax.xlane.f32.xlu0 %v597
    %v599 = vpop.xlane.xlu0 %598
    %v600 = vsub.f32 %v587, %v596
    %v601 = vsub.f32 %v590, %v599
    %v602 = vmul.f32 %v600, 1.442695
    %v603 = vpow.pop %v602
    %v604 = vmul.f32 %v601, 1.442695
    %v605 = vpow.pop %v604
    %v606 = vpack.c.bf16 %v605, %v603
    %611 = vrot.lane.b32.xlu0 %v520, 64
    %v612 = vpop.permute.xlu0 %611
    %613 = vrot.lane.b32.xlu0 %v521, 64
    %v614 = vpop.permute.xlu0 %613
    %615 = vrot.lane.b32.xlu0 %v522, 64
    %v616 = vpop.permute.xlu0 %615
    %617 = vrot.lane.b32.xlu0 %v523, 64
    %v618 = vpop.permute.xlu0 %617
    %v624 = vsel %vm593, %v606, 0
    %626 = vmatprep.subr.bf16.mxu0 0
    %627 = vmatpush1.bf16.msra.mxu0 %v612
    %628 = vmatprep.subr.bf16.mxu0 0
    %629 = vmatpush1.bf16.msra.mxu0 %v614
    %630 = vmatprep.subr.bf16.mxu0 0
    %631 = vmatpush1.bf16.msra.mxu0 %v616
    %632 = vmatprep.subr.bf16.mxu0 0
    %633 = vmatpush1.bf16.msra.mxu0 %v618
    %634 = vmatprep.subr.bf16.mxu0 0
    %635 = vmatpush1.bf16.msra.mxu0 0
    %636 = vmatprep.subr.bf16.mxu0 0
    %637 = vmatpush1.bf16.msra.mxu0 0
    %638 = vmatprep.subr.bf16.mxu0 0
    %639 = vmatpush1.bf16.msra.mxu0 0
    %640 = vmatprep.subr.bf16.mxu0 0
    %641 = vmatpush1.bf16.msra.mxu0 0
    %642 = vmatprep.subr.bf16.mxu0 0
    %643 = vmatpush1.bf16.msra.mxu0 0
    %644 = vmatprep.subr.bf16.mxu0 0
    %645 = vmatpush1.bf16.msra.mxu0 0
    %646 = vmatprep.subr.bf16.mxu0 0
    %647 = vmatpush1.bf16.msra.mxu0 0
    %648 = vmatprep.subr.bf16.mxu0 0
    %649 = vmatpush1.bf16.msra.mxu0 0
    %650 = vmatprep.subr.bf16.mxu0 0
    %651 = vmatpush1.bf16.msra.mxu0 0
    %652 = vmatprep.subr.bf16.mxu0 0
    %653 = vmatpush1.bf16.msra.mxu0 0
    %654 = vmatprep.subr.bf16.mxu0 0
    %655 = vmatpush1.bf16.msra.mxu0 0
    %656 = vmatprep.subr.bf16.mxu0 0
    %657 = vmatpush1.bf16.msra.mxu0 0
    %658 = vmatprep.mubr.bf16.mxu0 0
    %659 = vmatmul.mubr.bf16.gmra.mrb[0].mxu0 %v624
    %v660 = vpop.f32.mrb[0].mxu0
    %v661 = vadd.f32 0.0, %v660
    %v662 = vpop.f32.mrb[0].mxu0
    %v663 = vpop.f32.mrb[0].mxu0
    %v664 = vadd.f32 0.0, %v663
    %v665 = vpop.f32.mrb[0].mxu0
    %666 = vdwg.mxu0
    %v667 = vrcp.pop %v661
    %v668 = vrcp.pop %v664
    %671 = vrot.lane.b32.xlu0 %v667, 96
    %v672 = vpop.permute.xlu0 %671
    %673 = vrot.lane.b32.xlu0 %v668, 96
    %v674 = vpop.permute.xlu0 %673
    %v677 = vmul.f32 %v661, %v672
    %v678 = vmul.f32 %v664, %v674
    %v679 = vpack.c.bf16 %v678, %v677
    %v680 = vld [vmem:[%s10] sm:$0xf]
    %v681 = vld [vmem:[%s10 + $0x4] sm:$0xf]
    %v682 = vld [vmem:[%s10 + $0x8] sm:$0xf]
    %v683 = vld [vmem:[%s10 + $0xc] sm:$0xf]
    %v684 = vld [vmem:[%s11] sm:$0x1]
    %v686 = vlaneseq
    %v687 = vshrl.u32 %v686, 7
    %v688 = vsub.s32 0, %v687
    %v689 = vrot.slane %v684, %v688
    %v695 = vunpack.c.l.b16 %v680
    %v696 = vunpack.c.l.b16 %v681
    %v697 = vunpack.c.l.b16 %v682
    %v698 = vunpack.c.l.b16 %v683
    %v699 = vpack.c.b16 %v696, %v695
    %v700 = vpack.c.b16 %v698, %v697
    %v704 = vsel %vm391, %v679, 0
    %706 = vmatprep.subr.bf16.mxu0 0
    %707 = vmatpush1.bf16.msra.mxu0 %v699
    %708 = vmatprep.subr.bf16.mxu0 0
    %709 = vmatpush1.bf16.msra.mxu0 %v700
    %710 = vmatprep.subr.bf16.mxu0 0
    %711 = vmatpush1.bf16.msra.mxu0 0
    %712 = vmatprep.subr.bf16.mxu0 0
    %713 = vmatpush1.bf16.msra.mxu0 0
    %714 = vmatprep.subr.bf16.mxu0 0
    %715 = vmatpush1.bf16.msra.mxu0 0
    %716 = vmatprep.subr.bf16.mxu0 0
    %717 = vmatpush1.bf16.msra.mxu0 0
    %718 = vmatprep.subr.bf16.mxu0 0
    %719 = vmatpush1.bf16.msra.mxu0 0
    %720 = vmatprep.subr.bf16.mxu0 0
    %721 = vmatpush1.bf16.msra.mxu0 0
    %722 = vmatprep.subr.bf16.mxu0 0
    %723 = vmatpush1.bf16.msra.mxu0 0
    %724 = vmatprep.subr.bf16.mxu0 0
    %725 = vmatpush1.bf16.msra.mxu0 0
    %726 = vmatprep.subr.bf16.mxu0 0
    %727 = vmatpush1.bf16.msra.mxu0 0
    %728 = vmatprep.subr.bf16.mxu0 0
    %729 = vmatpush1.bf16.msra.mxu0 0
    %730 = vmatprep.subr.bf16.mxu0 0
    %731 = vmatpush1.bf16.msra.mxu0 0
    %732 = vmatprep.subr.bf16.mxu0 0
    %733 = vmatpush1.bf16.msra.mxu0 0
    %734 = vmatprep.subr.bf16.mxu0 0
    %735 = vmatpush1.bf16.msra.mxu0 0
    %736 = vmatprep.subr.bf16.mxu0 0
    %737 = vmatpush1.bf16.msra.mxu0 0
    %738 = vmatprep.mubr.bf16.mxu0 0
    %739 = vmatmul.mubr.bf16.gmra.mrb[0].mxu0 %v704
    %v740 = vpop.f32.mrb[0].mxu0
    %v741 = vadd.f32 %v689, %v740
    %v742 = vpop.f32.mrb[0].mxu0
    %v743 = vpop.f32.mrb[0].mxu0
    %v744 = vadd.f32 %v689, %v743
    %v745 = vpop.f32.mrb[0].mxu0
    %746 = vdwg.mxu0
    %v747 = vadd.f32 %v338, %v741
    %v748 = vadd.f32 %v339, %v744
    %v749 = vsel %vm391, %v747, 0.0
    %750 = vadd.xlane.f32.xlu0 %v749
    %v751 = vpop.xlane.xlu0 %750
    %v752 = vsel %vm391, %v748, 0.0
    %753 = vadd.xlane.f32.xlu0 %v752
    %v754 = vpop.xlane.xlu0 %753
    %v755 = vrcp.pop 32.0
    %v756 = vmul.f32 %v751, %v755
    %v757 = vmul.f32 %v754, %v755
    %v758 = vsub.f32 %v747, %v756
    %v759 = vsub.f32 %v748, %v757
    %v760 = vmul.f32 %v758, %v758
    %v761 = vmul.f32 %v759, %v759
    %v762 = vsel %vm391, %v760, 0.0
    %763 = vadd.xlane.f32.xlu0 %v762
    %v764 = vpop.xlane.xlu0 %763
    %v765 = vsel %vm391, %v761, 0.0
    %766 = vadd.xlane.f32.xlu0 %v765
    %v767 = vpop.xlane.xlu0 %766
    %v768 = vmul.f32 %v764, %v755
    %v769 = vmul.f32 %v767, %v755
    %v770 = vadd.f32 %v768, 1e-05
    %v771 = vadd.f32 %v769, 1e-05
    %v772 = vrsqrt.pop %v770
    %v773 = vrsqrt.pop %v771
    %v774 = vmul.f32 %v758, %v772
    %v775 = vmul.f32 %v759, %v773
    %v776 = vld [vmem:[%s12] sm:$0x1]
    %v778 = vlaneseq
    %v779 = vshrl.u32 %v778, 7
    %v780 = vsub.s32 0, %v779
    %v781 = vrot.slane %v776, %v780
    %v783 = vmul.f32 %v774, %v781
    %v784 = vmul.f32 %v775, %v781
    %v785 = vld [vmem:[%s13] sm:$0x1]
    %v787 = vlaneseq
    %v788 = vshrl.u32 %v787, 7
    %v789 = vsub.s32 0, %v788
    %v790 = vrot.slane %v785, %v789
    %v792 = vadd.f32 %v783, %v790
    %v793 = vadd.f32 %v784, %v790
    %v794 = vpack.c.bf16 %v793, %v792
    %v795 = vld [vmem:[%s14] sm:$0xf]
    %v796 = vld [vmem:[%s14 + $0x4] sm:$0xf]
    %v797 = vld [vmem:[%s14 + $0x8] sm:$0xf]
    %v798 = vld [vmem:[%s14 + $0xc] sm:$0xf]
    %v799 = vld [vmem:[%s15] sm:$0x1]
    %v801 = vlaneseq
    %v802 = vshrl.u32 %v801, 7
    %v803 = vsub.s32 0, %v802
    %v804 = vrot.slane %v799, %v803
    %v810 = vunpack.c.l.b16 %v795
    %v811 = vunpack.c.l.b16 %v796
    %v812 = vunpack.c.l.b16 %v797
    %v813 = vunpack.c.l.b16 %v798
    %v814 = vpack.c.b16 %v811, %v810
    %v815 = vpack.c.b16 %v813, %v812
    %v819 = vsel %vm391, %v794, 0
    %821 = vmatprep.subr.bf16.mxu0 0
    %822 = vmatpush1.bf16.msra.mxu0 %v814
    %823 = vmatprep.subr.bf16.mxu0 0
    %824 = vmatpush1.bf16.msra.mxu0 %v815
    %825 = vmatprep.subr.bf16.mxu0 0
    %826 = vmatpush1.bf16.msra.mxu0 0
    %827 = vmatprep.subr.bf16.mxu0 0
    %828 = vmatpush1.bf16.msra.mxu0 0
    %829 = vmatprep.subr.bf16.mxu0 0
    %830 = vmatpush1.bf16.msra.mxu0 0
    %831 = vmatprep.subr.bf16.mxu0 0
    %832 = vmatpush1.bf16.msra.mxu0 0
    %833 = vmatprep.subr.bf16.mxu0 0
    %834 = vmatpush1.bf16.msra.mxu0 0
    %835 = vmatprep.subr.bf16.mxu0 0
    %836 = vmatpush1.bf16.msra.mxu0 0
    %837 = vmatprep.subr.bf16.mxu0 0
    %838 = vmatpush1.bf16.msra.mxu0 0
    %839 = vmatprep.subr.bf16.mxu0 0
    %840 = vmatpush1.bf16.msra.mxu0 0
    %841 = vmatprep.subr.bf16.mxu0 0
    %842 = vmatpush1.bf16.msra.mxu0 0
    %843 = vmatprep.subr.bf16.mxu0 0
    %844 = vmatpush1.bf16.msra.mxu0 0
    %845 = vmatprep.subr.bf16.mxu0 0
    %846 = vmatpush1.bf16.msra.mxu0 0
    %847 = vmatprep.subr.bf16.mxu0 0
    %848 = vmatpush1.bf16.msra.mxu0 0
    %849 = vmatprep.subr.bf16.mxu0 0
    %850 = vmatpush1.bf16.msra.mxu0 0
    %851 = vmatprep.subr.bf16.mxu0 0
    %852 = vmatpush1.bf16.msra.mxu0 0
    %853 = vmatprep.mubr.bf16.mxu0 0
    %854 = vmatmul.mubr.bf16.gmra.mrb[0].mxu0 %v819
    %v855 = vpop.f32.mrb[0].mxu0
    %v856 = vadd.f32 %v804, %v855
    %v857 = vpop.f32.mrb[0].mxu0
    %v858 = vpop.f32.mrb[0].mxu0
    %v859 = vadd.f32 %v804, %v858
    %v860 = vpop.f32.mrb[0].mxu0
    %861 = vdwg.mxu0
    %v862 = vmax.f32 %v856, 0.0
    %v863 = vmax.f32 %v859, 0.0
    %v864 = vpack.c.bf16 %v863, %v862
    %v865 = vld [vmem:[%s16] sm:$0xf]
    %v866 = vld [vmem:[%s16 + $0x4] sm:$0xf]
    %v867 = vld [vmem:[%s16 + $0x8] sm:$0xf]
    %v868 = vld [vmem:[%s16 + $0xc] sm:$0xf]
    %v869 = vld [vmem:[%s16 + $0x10] sm:$0xf]
    %v870 = vld [vmem:[%s16 + $0x14] sm:$0xf]
    %v871 = vld [vmem:[%s16 + $0x18] sm:$0xf]
    %v872 = vld [vmem:[%s16 + $0x1c] sm:$0xf]
    %v873 = vld [vmem:[%s17] sm:$0x1]
    %v875 = vlaneseq
    %v876 = vshrl.u32 %v875, 7
    %v877 = vsub.s32 0, %v876
    %v878 = vrot.slane %v873, %v877
    %v888 = vunpack.c.l.b16 %v865
    %v889 = vunpack.c.l.b16 %v866
    %v890 = vunpack.c.l.b16 %v867
    %v891 = vunpack.c.l.b16 %v868
    %v892 = vunpack.c.l.b16 %v869
    %v893 = vunpack.c.l.b16 %v870
    %v894 = vunpack.c.l.b16 %v871
    %v895 = vunpack.c.l.b16 %v872
    %v896 = vpack.c.b16 %v889, %v888
    %v897 = vpack.c.b16 %v891, %v890
    %v898 = vpack.c.b16 %v893, %v892
    %v899 = vpack.c.b16 %v895, %v894
    %v905 = vsel %vm593, %v864, 0
    %907 = vmatprep.subr.bf16.mxu0 0
    %908 = vmatpush1.bf16.msra.mxu0 %v896
    %909 = vmatprep.subr.bf16.mxu0 0
    %910 = vmatpush1.bf16.msra.mxu0 %v897
    %911 = vmatprep.subr.bf16.mxu0 0
    %912 = vmatpush1.bf16.msra.mxu0 %v898
    %913 = vmatprep.subr.bf16.mxu0 0
    %914 = vmatpush1.bf16.msra.mxu0 %v899
    %915 = vmatprep.subr.bf16.mxu0 0
    %916 = vmatpush1.bf16.msra.mxu0 0
    %917 = vmatprep.subr.bf16.mxu0 0
    %918 = vmatpush1.bf16.msra.mxu0 0
    %919 = vmatprep.subr.bf16.mxu0 0
    %920 = vmatpush1.bf16.msra.mxu0 0
    %921 = vmatprep.subr.bf16.mxu0 0
    %922 = vmatpush1.bf16.msra.mxu0 0
    %923 = vmatprep.subr.bf16.mxu0 0
    %924 = vmatpush1.bf16.msra.mxu0 0
    %925 = vmatprep.subr.bf16.mxu0 0
    %926 = vmatpush1.bf16.msra.mxu0 0
    %927 = vmatprep.subr.bf16.mxu0 0
    %928 = vmatpush1.bf16.msra.mxu0 0
    %929 = vmatprep.subr.bf16.mxu0 0
    %930 = vmatpush1.bf16.msra.mxu0 0
    %931 = vmatprep.subr.bf16.mxu0 0
    %932 = vmatpush1.bf16.msra.mxu0 0
    %933 = vmatprep.subr.bf16.mxu0 0
    %934 = vmatpush1.bf16.msra.mxu0 0
    %935 = vmatprep.subr.bf16.mxu0 0
    %936 = vmatpush1.bf16.msra.mxu0 0
    %937 = vmatprep.subr.bf16.mxu0 0
    %938 = vmatpush1.bf16.msra.mxu0 0
    %939 = vmatprep.mubr.bf16.mxu0 0
    %940 = vmatmul.mubr.bf16.gmra.mrb[0].mxu0 %v905
    %v941 = vpop.f32.mrb[0].mxu0
    %v942 = vadd.f32 %v878, %v941
    %v943 = vpop.f32.mrb[0].mxu0
    %v944 = vpop.f32.mrb[0].mxu0
    %v945 = vadd.f32 %v878, %v944
    %v946 = vpop.f32.mrb[0].mxu0
    %947 = vdwg.mxu0
    %v948 = vadd.f32 %v792, %v942
    %v949 = vadd.f32 %v793, %v945
    %v950 = vsel %vm391, %v948, 0.0
    %951 = vadd.xlane.f32.xlu0 %v950
    %v952 = vpop.xlane.xlu0 %951
    %v953 = vsel %vm391, %v949, 0.0
    %954 = vadd.xlane.f32.xlu0 %v953
    %v955 = vpop.xlane.xlu0 %954
    %v956 = vmul.f32 %v952, %v755
    %v957 = vmul.f32 %v955, %v755
    %v958 = vsub.f32 %v948, %v956
    %v959 = vsub.f32 %v949, %v957
    %v960 = vmul.f32 %v958, %v958
    %v961 = vmul.f32 %v959, %v959
    %v962 = vsel %vm391, %v960, 0.0
    %963 = vadd.xlane.f32.xlu0 %v962
    %v964 = vpop.xlane.xlu0 %963
    %v965 = vsel %vm391, %v961, 0.0
    %966 = vadd.xlane.f32.xlu0 %v965
    %v967 = vpop.xlane.xlu0 %966
    %v968 = vmul.f32 %v964, %v755
    %v969 = vmul.f32 %v967, %v755
    %v970 = vadd.f32 %v968, 1e-05
    %v971 = vadd.f32 %v969, 1e-05
    %v972 = vrsqrt.pop %v970
    %v973 = vrsqrt.pop %v971
    %v974 = vmul.f32 %v958, %v972
    %v975 = vmul.f32 %v959, %v973
    %v976 = vld [vmem:[%s18] sm:$0x1]
    %v978 = vlaneseq
    %v979 = vshrl.u32 %v978, 7
    %v980 = vsub.s32 0, %v979
    %v981 = vrot.slane %v976, %v980
    %v983 = vmul.f32 %v974, %v981
    %v984 = vmul.f32 %v975, %v981
    %v985 = vld [vmem:[%s19] sm:$0x1]
    %v987 = vlaneseq
    %v988 = vshrl.u32 %v987, 7
    %v989 = vsub.s32 0, %v988
    %v990 = vrot.slane %v985, %v989
    %v992 = vadd.f32 %v983, %v990
    %v993 = vadd.f32 %v984, %v990
    %v994 = vpack.c.bf16 %v993, %v992
    %s995 = scalar_lea.vmem %s8, 16
    %v996 = vld [vmem:[%s995] sm:$0xf]
    %v997 = vld [vmem:[%s995 + $0x4] sm:$0xf]
    %v998 = vld [vmem:[%s995 + $0x8] sm:$0xf]
    %v999 = vld [vmem:[%s995 + $0xc] sm:$0xf]
    %s1000 = scalar_lea.vmem %s9, 1
    %v1001 = vld [vmem:[%s1000] sm:$0x1]
    %v1003 = vlaneseq
    %v1004 = vshrl.u32 %v1003, 7
    %v1005 = vsub.s32 0, %v1004
    %v1006 = vrot.slane %v1001, %v1005
    %v1012 = vunpack.c.l.b16 %v996
    %v1013 = vunpack.c.l.b16 %v997
    %v1014 = vunpack.c.l.b16 %v998
    %v1015 = vunpack.c.l.b16 %v999
    %v1016 = vpack.c.b16 %v1013, %v1012
    %v1017 = vpack.c.b16 %v1015, %v1014
    %v1021 = vsel %vm391, %v994, 0
    %1023 = vmatprep.subr.bf16.mxu0 0
    %1024 = vmatpush1.bf16.msra.mxu0 %v1016
    %1025 = vmatprep.subr.bf16.mxu0 0
    %1026 = vmatpush1.bf16.msra.mxu0 %v1017
    %1027 = vmatprep.subr.bf16.mxu0 0
    %1028 = vmatpush1.bf16.msra.mxu0 0
    %1029 = vmatprep.subr.bf16.mxu0 0
    %1030 = vmatpush1.bf16.msra.mxu0 0
    %1031 = vmatprep.subr.bf16.mxu0 0
    %1032 = vmatpush1.bf16.msra.mxu0 0
    %1033 = vmatprep.subr.bf16.mxu0 0
    %1034 = vmatpush1.bf16.msra.mxu0 0
    %1035 = vmatprep.subr.bf16.mxu0 0
    %1036 = vmatpush1.bf16.msra.mxu0 0
    %1037 = vmatprep.subr.bf16.mxu0 0
    %1038 = vmatpush1.bf16.msra.mxu0 0
    %1039 = vmatprep.subr.bf16.mxu0 0
    %1040 = vmatpush1.bf16.msra.mxu0 0
    %1041 = vmatprep.subr.bf16.mxu0 0
    %1042 = vmatpush1.bf16.msra.mxu0 0
    %1043 = vmatprep.subr.bf16.mxu0 0
    %1044 = vmatpush1.bf16.msra.mxu0 0
    %1045 = vmatprep.subr.bf16.mxu0 0
    %1046 = vmatpush1.bf16.msra.mxu0 0
    %1047 = vmatprep.subr.bf16.mxu0 0
    %1048 = vmatpush1.bf16.msra.mxu0 0
    %1049 = vmatprep.subr.bf16.mxu0 0
    %1050 = vmatpush1.bf16.msra.mxu0 0
    %1051 = vmatprep.subr.bf16.mxu0 0
    %1052 = vmatpush1.bf16.msra.mxu0 0
    %1053 = vmatprep.subr.bf16.mxu0 0
    %1054 = vmatpush1.bf16.msra.mxu0 0
    %1055 = vmatprep.mubr.bf16.mxu0 0
    %1056 = vmatmul.mubr.bf16.gmra.mrb[0].mxu0 %v1021
    %v1057 = vpop.f32.mrb[0].mxu0
    %v1058 = vadd.f32 %v1006, %v1057
    %v1059 = vpop.f32.mrb[0].mxu0
    %v1060 = vpop.f32.mrb[0].mxu0
    %v1061 = vadd.f32 %v1006, %v1060
    %v1062 = vpop.f32.mrb[0].mxu0
    %1063 = vdwg.mxu0
    %v1064 = vmul.f32 %v1058, %v445
    %v1065 = vmul.f32 %v1061, %v447
    %v1066 = vmul.f32 %v1058, %v449
    %v1067 = vmul.f32 %v1061, %v451
    %v1068 = vmul.f32 %v1058, %v453
    %v1069 = vmul.f32 %v1061, %v455
    %v1070 = vmul.f32 %v1058, %v457
    %v1071 = vmul.f32 %v1061, %v459
    %v1072 = vpack.c.bf16 %v1065, %v1064
    %v1073 = vpack.c.bf16 %v1067, %v1066
    %v1074 = vpack.c.bf16 %v1069, %v1068
    %v1075 = vpack.c.bf16 %v1071, %v1070
    %v1076 = vmul.f32 %v1058, %v489
    %v1077 = vmul.f32 %v1061, %v491
    %v1078 = vmul.f32 %v1058, %v493
    %v1079 = vmul.f32 %v1061, %v495
    %v1080 = vmul.f32 %v1058, %v497
    %v1081 = vmul.f32 %v1061, %v499
    %v1082 = vmul.f32 %v1058, %v501
    %v1083 = vmul.f32 %v1061, %v503
    %v1084 = vpack.c.bf16 %v1077, %v1076
    %v1085 = vpack.c.bf16 %v1079, %v1078
    %v1086 = vpack.c.bf16 %v1081, %v1080
    %v1087 = vpack.c.bf16 %v1083, %v1082
    %v1088 = vpack.c.bf16 %v1061, %v1058
    %1093 = vrot.lane.b32.xlu0 %v1072, 96
    %v1094 = vpop.permute.xlu0 %1093
    %1095 = vrot.lane.b32.xlu0 %v1073, 96
    %v1096 = vpop.permute.xlu0 %1095
    %1097 = vrot.lane.b32.xlu0 %v1074, 96
    %v1098 = vpop.permute.xlu0 %1097
    %1099 = vrot.lane.b32.xlu0 %v1075, 96
    %v1100 = vpop.permute.xlu0 %1099
    %v1102 = vsel %vm391, %v1088, 0
    %v1105 = vsel %vm391, %v1094, 0
    %v1108 = vsel %vm391, %v1096, 0
    %v1111 = vsel %vm391, %v1098, 0
    %v1114 = vsel %vm391, %v1100, 0
    %1116 = vmatprep.subr.bf16.mxu0 0
    %1117 = vmatpush1.bf16.xpose.msra.mxu0 %v1105
    %1118 = vmatprep.subr.bf16.mxu0 0
    %1119 = vmatpush1.bf16.xpose.msra.mxu0 %v1108
    %1120 = vmatprep.subr.bf16.mxu0 0
    %1121 = vmatpush1.bf16.xpose.msra.mxu0 %v1111
    %1122 = vmatprep.subr.bf16.mxu0 0
    %1123 = vmatpush1.bf16.xpose.msra.mxu0 %v1114
    %1124 = vmatprep.subr.bf16.mxu0 0
    %1125 = vmatpush1.bf16.xpose.msra.mxu0 0
    %1126 = vmatprep.subr.bf16.mxu0 0
    %1127 = vmatpush1.bf16.xpose.msra.mxu0 0
    %1128 = vmatprep.subr.bf16.mxu0 0
    %1129 = vmatpush1.bf16.xpose.msra.mxu0 0
    %1130 = vmatprep.subr.bf16.mxu0 0
    %1131 = vmatpush1.bf16.xpose.msra.mxu0 0
    %1132 = vmatprep.subr.bf16.mxu0 0
    %1133 = vmatpush1.bf16.xpose.msra.mxu0 0
    %1134 = vmatprep.subr.bf16.mxu0 0
    %1135 = vmatpush1.bf16.xpose.msra.mxu0 0
    %1136 = vmatprep.subr.bf16.mxu0 0
    %1137 = vmatpush1.bf16.xpose.msra.mxu0 0
    %1138 = vmatprep.subr.bf16.mxu0 0
    %1139 = vmatpush1.bf16.xpose.msra.mxu0 0
    %1140 = vmatprep.subr.bf16.mxu0 0
    %1141 = vmatpush1.bf16.xpose.msra.mxu0 0
    %1142 = vmatprep.subr.bf16.mxu0 0
    %1143 = vmatpush1.bf16.xpose.msra.mxu0 0
    %1144 = vmatprep.subr.bf16.mxu0 0
    %1145 = vmatpush1.bf16.xpose.msra.mxu0 0
    %1146 = vmatprep.subr.bf16.mxu0 0
    %1147 = vmatpush1.bf16.xpose.msra.mxu0 0
    %1148 = vmatprep.mubr.bf16.mxu0 0
    %1149 = vmatmul.mubr.bf16.gmra.mrb[0].mxu0 %v1102
    %v1150 = vpop.f32.mrb[0].mxu0
    %v1151 = vadd.f32 %v349, %v1150
    %v1152 = vpop.f32.mrb[0].mxu0
    %v1153 = vpop.f32.mrb[0].mxu0
    %v1154 = vadd.f32 %v350, %v1153
    %v1155 = vpop.f32.mrb[0].mxu0
    %1156 = vdwg.mxu0
    %v1157 = vsel %vm593, %v1151, -inf
    %1158 = vmax.xlane.f32.xlu0 %v1157
    %v1159 = vpop.xlane.xlu0 %1158
    %v1160 = vsel %vm593, %v1154, -inf
    %1161 = vmax.xlane.f32.xlu0 %v1160
    %v1162 = vpop.xlane.xlu0 %1161
    %v1163 = vsub.f32 %v1151, %v1159
    %v1164 = vsub.f32 %v1154, %v1162
    %v1165 = vmul.f32 %v1163, 1.442695
    %v1166 = vpow.pop %v1165
    %v1167 = vmul.f32 %v1164, 1.442695
    %v1168 = vpow.pop %v1167
    %v1169 = vpack.c.bf16 %v1168, %v1166
    %1174 = vrot.lane.b32.xlu0 %v1084, 64
    %v1175 = vpop.permute.xlu0 %1174
    %1176 = vrot.lane.b32.xlu0 %v1085, 64
    %v1177 = vpop.permute.xlu0 %1176
    %1178 = vrot.lane.b32.xlu0 %v1086, 64
    %v1179 = vpop.permute.xlu0 %1178
    %1180 = vrot.lane.b32.xlu0 %v1087, 64
    %v1181 = vpop.permute.xlu0 %1180
    %v1187 = vsel %vm593, %v1169, 0
    %1189 = vmatprep.subr.bf16.mxu0 0
    %1190 = vmatpush1.bf16.msra.mxu0 %v1175
    %1191 = vmatprep.subr.bf16.mxu0 0
    %1192 = vmatpush1.bf16.msra.mxu0 %v1177
    %1193 = vmatprep.subr.bf16.mxu0 0
    %1194 = vmatpush1.bf16.msra.mxu0 %v1179
    %1195 = vmatprep.subr.bf16.mxu0 0
    %1196 = vmatpush1.bf16.msra.mxu0 %v1181
    %1197 = vmatprep.subr.bf16.mxu0 0
    %1198 = vmatpush1.bf16.msra.mxu0 0
    %1199 = vmatprep.subr.bf16.mxu0 0
    %1200 = vmatpush1.bf16.msra.mxu0 0
    %1201 = vmatprep.subr.bf16.mxu0 0
    %1202 = vmatpush1.bf16.msra.mxu0 0
    %1203 = vmatprep.subr.bf16.mxu0 0
    %1204 = vmatpush1.bf16.msra.mxu0 0
    %1205 = vmatprep.subr.bf16.mxu0 0
    %1206 = vmatpush1.bf16.msra.mxu0 0
    %1207 = vmatprep.subr.bf16.mxu0 0
    %1208 = vmatpush1.bf16.msra.mxu0 0
    %1209 = vmatprep.subr.bf16.mxu0 0
    %1210 = vmatpush1.bf16.msra.mxu0 0
    %1211 = vmatprep.subr.bf16.mxu0 0
    %1212 = vmatpush1.bf16.msra.mxu0 0
    %1213 = vmatprep.subr.bf16.mxu0 0
    %1214 = vmatpush1.bf16.msra.mxu0 0
    %1215 = vmatprep.subr.bf16.mxu0 0
    %1216 = vmatpush1.bf16.msra.mxu0 0
    %1217 = vmatprep.subr.bf16.mxu0 0
    %1218 = vmatpush1.bf16.msra.mxu0 0
    %1219 = vmatprep.subr.bf16.mxu0 0
    %1220 = vmatpush1.bf16.msra.mxu0 0
    %1221 = vmatprep.mubr.bf16.mxu0 0
    %1222 = vmatmul.mubr.bf16.gmra.mrb[0].mxu0 %v1187
    %v1223 = vpop.f32.mrb[0].mxu0
    %v1224 = vadd.f32 0.0, %v1223
    %v1225 = vpop.f32.mrb[0].mxu0
    %v1226 = vpop.f32.mrb[0].mxu0
    %v1227 = vadd.f32 0.0, %v1226
    %v1228 = vpop.f32.mrb[0].mxu0
    %1229 = vdwg.mxu0
    %v1230 = vrcp.pop %v1224
    %v1231 = vrcp.pop %v1227
    %1234 = vrot.lane.b32.xlu0 %v1230, 96
    %v1235 = vpop.permute.xlu0 %1234
    %1236 = vrot.lane.b32.xlu0 %v1231, 96
    %v1237 = vpop.permute.xlu0 %1236
    %v1240 = vmul.f32 %v1224, %v1235
    %v1241 = vmul.f32 %v1227, %v1237
    %v1242 = vpack.c.bf16 %v1241, %v1240
    %s1243 = scalar_lea.vmem %s10, 16
    %v1244 = vld [vmem:[%s1243] sm:$0xf]
    %v1245 = vld [vmem:[%s1243 + $0x4] sm:$0xf]
    %v1246 = vld [vmem:[%s1243 + $0x8] sm:$0xf]
    %v1247 = vld [vmem:[%s1243 + $0xc] sm:$0xf]
    %s1248 = scalar_lea.vmem %s11, 1
    %v1249 = vld [vmem:[%s1248] sm:$0x1]
    %v1251 = vlaneseq
    %v1252 = vshrl.u32 %v1251, 7
    %v1253 = vsub.s32 0, %v1252
    %v1254 = vrot.slane %v1249, %v1253
    %v1260 = vunpack.c.l.b16 %v1244
    %v1261 = vunpack.c.l.b16 %v1245
    %v1262 = vunpack.c.l.b16 %v1246
    %v1263 = vunpack.c.l.b16 %v1247
    %v1264 = vpack.c.b16 %v1261, %v1260
    %v1265 = vpack.c.b16 %v1263, %v1262
    %v1269 = vsel %vm391, %v1242, 0
    %1271 = vmatprep.subr.bf16.mxu0 0
    %1272 = vmatpush1.bf16.msra.mxu0 %v1264
    %1273 = vmatprep.subr.bf16.mxu0 0
    %1274 = vmatpush1.bf16.msra.mxu0 %v1265
    %1275 = vmatprep.subr.bf16.mxu0 0
    %1276 = vmatpush1.bf16.msra.mxu0 0
    %1277 = vmatprep.subr.bf16.mxu0 0
    %1278 = vmatpush1.bf16.msra.mxu0 0
    %1279 = vmatprep.subr.bf16.mxu0 0
    %1280 = vmatpush1.bf16.msra.mxu0 0
    %1281 = vmatprep.subr.bf16.mxu0 0
    %1282 = vmatpush1.bf16.msra.mxu0 0
    %1283 = vmatprep.subr.bf16.mxu0 0
    %1284 = vmatpush1.bf16.msra.mxu0 0
    %1285 = vmatprep.subr.bf16.mxu0 0
    %1286 = vmatpush1.bf16.msra.mxu0 0
    %1287 = vmatprep.subr.bf16.mxu0 0
    %1288 = vmatpush1.bf16.msra.mxu0 0
    %1289 = vmatprep.subr.bf16.mxu0 0
    %1290 = vmatpush1.bf16.msra.mxu0 0
    %1291 = vmatprep.subr.bf16.mxu0 0
    %1292 = vmatpush1.bf16.msra.mxu0 0
    %1293 = vmatprep.subr.bf16.mxu0 0
    %1294 = vmatpush1.bf16.msra.mxu0 0
    %1295 = vmatprep.subr.bf16.mxu0 0
    %1296 = vmatpush1.bf16.msra.mxu0 0
    %1297 = vmatprep.subr.bf16.mxu0 0
    %1298 = vmatpush1.bf16.msra.mxu0 0
    %1299 = vmatprep.subr.bf16.mxu0 0
    %1300 = vmatpush1.bf16.msra.mxu0 0
    %1301 = vmatprep.subr.bf16.mxu0 0
    %1302 = vmatpush1.bf16.msra.mxu0 0
    %1303 = vmatprep.mubr.bf16.mxu0 0
    %1304 = vmatmul.mubr.bf16.gmra.mrb[0].mxu0 %v1269
    %v1305 = vpop.f32.mrb[0].mxu0
    %v1306 = vadd.f32 %v1254, %v1305
    %v1307 = vpop.f32.mrb[0].mxu0
    %v1308 = vpop.f32.mrb[0].mxu0
    %v1309 = vadd.f32 %v1254, %v1308
    %v1310 = vpop.f32.mrb[0].mxu0
    %1311 = vdwg.mxu0
    %v1312 = vadd.f32 %v992, %v1306
    %v1313 = vadd.f32 %v993, %v1309
    %v1314 = vsel %vm391, %v1312, 0.0
    %1315 = vadd.xlane.f32.xlu0 %v1314
    %v1316 = vpop.xlane.xlu0 %1315
    %v1317 = vsel %vm391, %v1313, 0.0
    %1318 = vadd.xlane.f32.xlu0 %v1317
    %v1319 = vpop.xlane.xlu0 %1318
    %v1320 = vmul.f32 %v1316, %v755
    %v1321 = vmul.f32 %v1319, %v755
    %v1322 = vsub.f32 %v1312, %v1320
    %v1323 = vsub.f32 %v1313, %v1321
    %v1324 = vmul.f32 %v1322, %v1322
    %v1325 = vmul.f32 %v1323, %v1323
    %v1326 = vsel %vm391, %v1324, 0.0
    %1327 = vadd.xlane.f32.xlu0 %v1326
    %v1328 = vpop.xlane.xlu0 %1327
    %v1329 = vsel %vm391, %v1325, 0.0
    %1330 = vadd.xlane.f32.xlu0 %v1329
    %v1331 = vpop.xlane.xlu0 %1330
    %v1332 = vmul.f32 %v1328, %v755
    %v1333 = vmul.f32 %v1331, %v755
    %v1334 = vadd.f32 %v1332, 1e-05
    %v1335 = vadd.f32 %v1333, 1e-05
    %v1336 = vrsqrt.pop %v1334
    %v1337 = vrsqrt.pop %v1335
    %v1338 = vmul.f32 %v1322, %v1336
    %v1339 = vmul.f32 %v1323, %v1337
    %s1340 = scalar_lea.vmem %s12, 1
    %v1341 = vld [vmem:[%s1340] sm:$0x1]
    %v1343 = vlaneseq
    %v1344 = vshrl.u32 %v1343, 7
    %v1345 = vsub.s32 0, %v1344
    %v1346 = vrot.slane %v1341, %v1345
    %v1348 = vmul.f32 %v1338, %v1346
    %v1349 = vmul.f32 %v1339, %v1346
    %s1350 = scalar_lea.vmem %s13, 1
    %v1351 = vld [vmem:[%s1350] sm:$0x1]
    %v1353 = vlaneseq
    %v1354 = vshrl.u32 %v1353, 7
    %v1355 = vsub.s32 0, %v1354
    %v1356 = vrot.slane %v1351, %v1355
    %v1358 = vadd.f32 %v1348, %v1356
    %v1359 = vadd.f32 %v1349, %v1356
    %v1360 = vpack.c.bf16 %v1359, %v1358
    %s1361 = scalar_lea.vmem %s14, 16
    %v1362 = vld [vmem:[%s1361] sm:$0xf]
    %v1363 = vld [vmem:[%s1361 + $0x4] sm:$0xf]
    %v1364 = vld [vmem:[%s1361 + $0x8] sm:$0xf]
    %v1365 = vld [vmem:[%s1361 + $0xc] sm:$0xf]
    %s1366 = scalar_lea.vmem %s15, 1
    %v1367 = vld [vmem:[%s1366] sm:$0x1]
    %v1369 = vlaneseq
    %v1370 = vshrl.u32 %v1369, 7
    %v1371 = vsub.s32 0, %v1370
    %v1372 = vrot.slane %v1367, %v1371
    %v1378 = vunpack.c.l.b16 %v1362
    %v1379 = vunpack.c.l.b16 %v1363
    %v1380 = vunpack.c.l.b16 %v1364
    %v1381 = vunpack.c.l.b16 %v1365
    %v1382 = vpack.c.b16 %v1379, %v1378
    %v1383 = vpack.c.b16 %v1381, %v1380
    %v1387 = vsel %vm391, %v1360, 0
    %1389 = vmatprep.subr.bf16.mxu0 0
    %1390 = vmatpush1.bf16.msra.mxu0 %v1382
    %1391 = vmatprep.subr.bf16.mxu0 0
    %1392 = vmatpush1.bf16.msra.mxu0 %v1383
    %1393 = vmatprep.subr.bf16.mxu0 0
    %1394 = vmatpush1.bf16.msra.mxu0 0
    %1395 = vmatprep.subr.bf16.mxu0 0
    %1396 = vmatpush1.bf16.msra.mxu0 0
    %1397 = vmatprep.subr.bf16.mxu0 0
    %1398 = vmatpush1.bf16.msra.mxu0 0
    %1399 = vmatprep.subr.bf16.mxu0 0
    %1400 = vmatpush1.bf16.msra.mxu0 0
    %1401 = vmatprep.subr.bf16.mxu0 0
    %1402 = vmatpush1.bf16.msra.mxu0 0
    %1403 = vmatprep.subr.bf16.mxu0 0
    %1404 = vmatpush1.bf16.msra.mxu0 0
    %1405 = vmatprep.subr.bf16.mxu0 0
    %1406 = vmatpush1.bf16.msra.mxu0 0
    %1407 = vmatprep.subr.bf16.mxu0 0
    %1408 = vmatpush1.bf16.msra.mxu0 0
    %1409 = vmatprep.subr.bf16.mxu0 0
    %1410 = vmatpush1.bf16.msra.mxu0 0
    %1411 = vmatprep.subr.bf16.mxu0 0
    %1412 = vmatpush1.bf16.msra.mxu0 0
    %1413 = vmatprep.subr.bf16.mxu0 0
    %1414 = vmatpush1.bf16.msra.mxu0 0
    %1415 = vmatprep.subr.bf16.mxu0 0
    %1416 = vmatpush1.bf16.msra.mxu0 0
    %1417 = vmatprep.subr.bf16.mxu0 0
    %1418 = vmatpush1.bf16.msra.mxu0 0
    %1419 = vmatprep.subr.bf16.mxu0 0
    %1420 = vmatpush1.bf16.msra.mxu0 0
    %1421 = vmatprep.mubr.bf16.mxu0 0
    %1422 = vmatmul.mubr.bf16.gmra.mrb[0].mxu0 %v1387
    %v1423 = vpop.f32.mrb[0].mxu0
    %v1424 = vadd.f32 %v1372, %v1423
    %v1425 = vpop.f32.mrb[0].mxu0
    %v1426 = vpop.f32.mrb[0].mxu0
    %v1427 = vadd.f32 %v1372, %v1426
    %v1428 = vpop.f32.mrb[0].mxu0
    %1429 = vdwg.mxu0
    %v1430 = vmax.f32 %v1424, 0.0
    %v1431 = vmax.f32 %v1427, 0.0
    %v1432 = vpack.c.bf16 %v1431, %v1430
    %s1433 = scalar_lea.vmem %s16, 32
    %v1434 = vld [vmem:[%s1433] sm:$0xf]
    %v1435 = vld [vmem:[%s1433 + $0x4] sm:$0xf]
    %v1436 = vld [vmem:[%s1433 + $0x8] sm:$0xf]
    %v1437 = vld [vmem:[%s1433 + $0xc] sm:$0xf]
    %v1438 = vld [vmem:[%s1433 + $0x10] sm:$0xf]
    %v1439 = vld [vmem:[%s1433 + $0x14] sm:$0xf]
    %v1440 = vld [vmem:[%s1433 + $0x18] sm:$0xf]
    %v1441 = vld [vmem:[%s1433 + $0x1c] sm:$0xf]
    %s1442 = scalar_lea.vmem %s17, 1
    %v1443 = vld [vmem:[%s1442] sm:$0x1]
    %v1445 = vlaneseq
    %v1446 = vshrl.u32 %v1445, 7
    %v1447 = vsub.s32 0, %v1446
    %v1448 = vrot.slane %v1443, %v1447
    %v1458 = vunpack.c.l.b16 %v1434
    %v1459 = vunpack.c.l.b16 %v1435
    %v1460 = vunpack.c.l.b16 %v1436
    %v1461 = vunpack.c.l.b16 %v1437
    %v1462 = vunpack.c.l.b16 %v1438
    %v1463 = vunpack.c.l.b16 %v1439
    %v1464 = vunpack.c.l.b16 %v1440
    %v1465 = vunpack.c.l.b16 %v1441
    %v1466 = vpack.c.b16 %v1459, %v1458
    %v1467 = vpack.c.b16 %v1461, %v1460
    %v1468 = vpack.c.b16 %v1463, %v1462
    %v1469 = vpack.c.b16 %v1465, %v1464
    %v1475 = vsel %vm593, %v1432, 0
    %1477 = vmatprep.subr.bf16.mxu0 0
    %1478 = vmatpush1.bf16.msra.mxu0 %v1466
    %1479 = vmatprep.subr.bf16.mxu0 0
    %1480 = vmatpush1.bf16.msra.mxu0 %v1467
    %1481 = vmatprep.subr.bf16.mxu0 0
    %1482 = vmatpush1.bf16.msra.mxu0 %v1468
    %1483 = vmatprep.subr.bf16.mxu0 0
    %1484 = vmatpush1.bf16.msra.mxu0 %v1469
    %1485 = vmatprep.subr.bf16.mxu0 0
    %1486 = vmatpush1.bf16.msra.mxu0 0
    %1487 = vmatprep.subr.bf16.mxu0 0
    %1488 = vmatpush1.bf16.msra.mxu0 0
    %1489 = vmatprep.subr.bf16.mxu0 0
    %1490 = vmatpush1.bf16.msra.mxu0 0
    %1491 = vmatprep.subr.bf16.mxu0 0
    %1492 = vmatpush1.bf16.msra.mxu0 0
    %1493 = vmatprep.subr.bf16.mxu0 0
    %1494 = vmatpush1.bf16.msra.mxu0 0
    %1495 = vmatprep.subr.bf16.mxu0 0
    %1496 = vmatpush1.bf16.msra.mxu0 0
    %1497 = vmatprep.subr.bf16.mxu0 0
    %1498 = vmatpush1.bf16.msra.mxu0 0
    %1499 = vmatprep.subr.bf16.mxu0 0
    %1500 = vmatpush1.bf16.msra.mxu0 0
    %1501 = vmatprep.subr.bf16.mxu0 0
    %1502 = vmatpush1.bf16.msra.mxu0 0
    %1503 = vmatprep.subr.bf16.mxu0 0
    %1504 = vmatpush1.bf16.msra.mxu0 0
    %1505 = vmatprep.subr.bf16.mxu0 0
    %1506 = vmatpush1.bf16.msra.mxu0 0
    %1507 = vmatprep.subr.bf16.mxu0 0
    %1508 = vmatpush1.bf16.msra.mxu0 0
    %1509 = vmatprep.mubr.bf16.mxu0 0
    %1510 = vmatmul.mubr.bf16.gmra.mrb[0].mxu0 %v1475
    %v1511 = vpop.f32.mrb[0].mxu0
    %v1512 = vadd.f32 %v1448, %v1511
    %v1513 = vpop.f32.mrb[0].mxu0
    %v1514 = vpop.f32.mrb[0].mxu0
    %v1515 = vadd.f32 %v1448, %v1514
    %v1516 = vpop.f32.mrb[0].mxu0
    %1517 = vdwg.mxu0
    %v1518 = vadd.f32 %v1358, %v1512
    %v1519 = vadd.f32 %v1359, %v1515
    %v1520 = vsel %vm391, %v1518, 0.0
    %1521 = vadd.xlane.f32.xlu0 %v1520
    %v1522 = vpop.xlane.xlu0 %1521
    %v1523 = vsel %vm391, %v1519, 0.0
    %1524 = vadd.xlane.f32.xlu0 %v1523
    %v1525 = vpop.xlane.xlu0 %1524
    %v1526 = vmul.f32 %v1522, %v755
    %v1527 = vmul.f32 %v1525, %v755
    %v1528 = vsub.f32 %v1518, %v1526
    %v1529 = vsub.f32 %v1519, %v1527
    %v1530 = vmul.f32 %v1528, %v1528
    %v1531 = vmul.f32 %v1529, %v1529
    %v1532 = vsel %vm391, %v1530, 0.0
    %1533 = vadd.xlane.f32.xlu0 %v1532
    %v1534 = vpop.xlane.xlu0 %1533
    %v1535 = vsel %vm391, %v1531, 0.0
    %1536 = vadd.xlane.f32.xlu0 %v1535
    %v1537 = vpop.xlane.xlu0 %1536
    %v1538 = vmul.f32 %v1534, %v755
    %v1539 = vmul.f32 %v1537, %v755
    %v1540 = vadd.f32 %v1538, 1e-05
    %v1541 = vadd.f32 %v1539, 1e-05
    %v1542 = vrsqrt.pop %v1540
    %v1543 = vrsqrt.pop %v1541
    %v1544 = vmul.f32 %v1528, %v1542
    %v1545 = vmul.f32 %v1529, %v1543
    %s1546 = scalar_lea.vmem %s18, 1
    %v1547 = vld [vmem:[%s1546] sm:$0x1]
    %v1549 = vlaneseq
    %v1550 = vshrl.u32 %v1549, 7
    %v1551 = vsub.s32 0, %v1550
    %v1552 = vrot.slane %v1547, %v1551
    %v1554 = vmul.f32 %v1544, %v1552
    %v1555 = vmul.f32 %v1545, %v1552
    %s1556 = scalar_lea.vmem %s19, 1
    %v1557 = vld [vmem:[%s1556] sm:$0x1]
    %v1559 = vlaneseq
    %v1560 = vshrl.u32 %v1559, 7
    %v1561 = vsub.s32 0, %v1560
    %v1562 = vrot.slane %v1557, %v1561
    %v1564 = vadd.f32 %v1554, %v1562
    %v1565 = vadd.f32 %v1555, %v1562
    %1566 = vst.msk [vmem:[#allocation2] sm:$0xff] %vm391, %v1564
    %1567 = vst.msk [vmem:[#allocation2 + $0x8] sm:$0xff] %vm391, %v1565
    // Predicated region
    $region82: #{image_encoder_forward.1} parent=1 // pred_check
      _
    $region83: #{image_encoder_forward.1} parent=1 // pred_check_branch
      %1569 = sbr.rel (0) target = $region85
    $region84: #{image_encoder_forward.1} parent=1 // pred_region
      %s1571 = ssub.s32 256, 256
      %1572 = vsyncadd [#allocation3], %s1571
      %s1573 = sshll.u32 [#allocation2], 4
      %s1574 = int_to_ptr.vmem [resolvable:$true] %s1573
      %1579 = dma.vmem_to_hbm [thread:$0]  %s1574, 256, %s20, [#allocation3], 128, 128, 8
    $region85: #{image_encoder_forward.1} parent=1 // pred_fallthru
      _
    // Predicated region
    $region86: #{image_encoder_forward.1} parent=1 // pred_check
      _
    $region87: #{image_encoder_forward.1} parent=1 // pred_check_branch
      %1581 = sbr.rel (0) target = $region89
    $region88: #{image_encoder_forward.1} parent=1 // pred_region
      %1582 = dma.done [#allocation3], 256
    $region89: #{image_encoder_forward.1} parent=1 // pred_fallthru
      _
    %1583 = vsyncpa [#allocation3], 1

</llo_original>
